<compile_context>
chip_gen: v7x
topology: tpu7x:2x2x1
jax: 0.10.0
libtpu: 0.0.40
codegen_flags: <defaults>
</compile_context>

<pallas_src>
import math
from functools import partial

import jax
import jax.numpy as jnp
from jax import lax
from jax.experimental import pallas as pl
from jax.experimental.pallas import tpu as pltpu


def _round_up(x, m):
    return ((x + m - 1) // m) * m


def _pad2(x, rows, cols, fill=0.0):
    base = jnp.full((rows, cols), fill, x.dtype)
    return base.at[: x.shape[0], : x.shape[1]].set(x)


def _pick_agg_tile(n, f_p, budget=32 << 20):
    """Row tile + padded node count for Pass B (adj bf16 row-slab @ resident xw)."""
    for tm in (512, 256, 128, 64, 32, 16):
        n_pad = _round_up(n, max(tm, 128))
        need = (2 * tm * n_pad * 2        # double-buffered adj row slab (bf16)
                + 2 * n_pad * f_p * 2     # resident xw (bf16, conservatively 2x)
                + 2 * tm * f_p * 4        # double-buffered f32 h tile
                + 4 * 8 * f_p * 4         # BN partial-stat outputs
                + 2 * tm * 4 + f_p * 4)   # rin / bias vectors
        if need <= budget and n_pad // tm >= 2:
            return tm, n_pad
    return 16, _round_up(n, 128)


def _row_tile(n_pad, per_row_bytes, budget=12 << 20):
    """Largest power-of-two row tile dividing n_pad within a VMEM budget."""
    for t in (1024, 512, 256, 128, 64, 32, 16):
        if n_pad % t == 0 and t * per_row_bytes <= budget:
            return t
    return 16


# --------------------------------------------------------------------------
# Pass A: dropout + feature transform (x @ W) + rsqrt(out-degree) row scaling
#         Output xw is bf16 (feeds the bf16 x bf16 aggregation matmul).
# --------------------------------------------------------------------------
def _make_feat_kernel(p_drop: float, tma: int, fin_p: int):
    keep = 1.0 - p_drop
    inv_keep = (1.0 / keep) if keep > 0.0 else 0.0
    # integer threshold on the top 24 random bits (no float convert needed)
    thresh24 = min(int(round(keep * float(1 << 24))), 1 << 24)

    def kernel(seed_ref, x_ref, w_ref, rout_ref, xw_ref):
        x = x_ref[...]
        if p_drop > 0.0:
            i = pl.program_id(0)                       # top-level only (safe)
            row = i * tma + lax.broadcasted_iota(jnp.int32, x.shape, 0)
            col = lax.broadcasted_iota(jnp.int32, x.shape, 1)
            idx = (row * fin_p + col).astype(jnp.uint32)
            s = seed_ref[0].astype(jnp.uint32)
            h = idx + s * jnp.uint32(0x9E3779B9)
            h = h ^ (h >> 16)
            h = h * jnp.uint32(0x7FEB352D)
            h = h ^ (h >> 15)
            h = h * jnp.uint32(0x846CA68B)
            h = h ^ (h >> 16)
            keep_mask = (h >> 8).astype(jnp.int32) < jnp.int32(thresh24)
            x = jnp.where(keep_mask, x * jnp.float32(inv_keep), jnp.float32(0.0))
        # bf16 x bf16 MXU matmul, f32 accumulation
        xw = jnp.dot(x.astype(jnp.bfloat16), w_ref[...],
                     preferred_element_type=jnp.float32)
        # fold rsqrt(deg_out) of the source nodes into the rows of x @ W
        xw_ref[...] = (xw * rout_ref[...]).astype(xw_ref.dtype)

    return kernel


# --------------------------------------------------------------------------
# Pass B: h = rsqrt(deg_in) * (A @ xw_scaled) + b ; PReLU(alpha1)
#         One bf16 x bf16 dot per row tile (xw fully VMEM-resident), plus
#         per-row-tile BatchNorm partial sums / sums-of-squares.
# --------------------------------------------------------------------------
def _make_agg_kernel(n_real: int, tm: int):
    def kernel(adj_ref, xw_ref, rin_ref, b_ref, alpha1_ref,
               h_ref, psum_ref, psumsq_ref):
        i = pl.program_id(0)                           # top-level only (safe)
        acc = jnp.dot(adj_ref[...], xw_ref[...],
                      preferred_element_type=jnp.float32)
        h = acc * rin_ref[...] + b_ref[...]            # rsqrt(deg_in), bias
        a1 = alpha1_ref[0]
        h = jnp.where(h > 0.0, h, a1 * h)              # GraphConv PReLU
        h_ref[...] = h
        # BatchNorm partial stats over real (non-padded) rows only.
        # NOTE: two-pass structure; stats accumulate in f32.  Var is later
        # formed as E[x^2]-E[x]^2 which is fine at these magnitudes.
        row = i * tm + lax.broadcasted_iota(jnp.int32, h.shape, 0)
        hm = jnp.where(row < n_real, h, 0.0)
        s = jnp.sum(hm, axis=0, keepdims=True)         # (1, F)
        ss = jnp.sum(hm * hm, axis=0, keepdims=True)   # (1, F)
        psum_ref[...] = jnp.broadcast_to(s, psum_ref.shape)
        psumsq_ref[...] = jnp.broadcast_to(ss, psumsq_ref.shape)

    return kernel


# --------------------------------------------------------------------------
# Pass C: pre-folded BatchNorm (y = h*scale + shift) + outer PReLU
# --------------------------------------------------------------------------
def _out_kernel(h_ref, scale_ref, shift_ref, alpha2_ref, o_ref):
    y = h_ref[...] * scale_ref[...] + shift_ref[...]
    a2 = alpha2_ref[0]
    o_ref[...] = jnp.where(y > 0.0, y, a2 * y)


# --------------------------------------------------------------------------
# Wrapper
# --------------------------------------------------------------------------
@partial(jax.jit, static_argnames=("p_drop", "eps"))
def encoder_forward(adj, feat, params, seed, *, p_drop, eps=1e-5):
    f32, bf16 = jnp.float32, jnp.bfloat16
    n, fin = feat.shape
    fout = params["w"].shape[1]

    fin_p = _round_up(fin, 128)
    # v6e/v7x MXUs are 256 wide on the output dim; only pad that far when the
    # real feature dim actually exceeds 128.
    f_p = _round_up(fout, 256) if fout > 128 else _round_up(fout, 128)

    tm, n_pad = _pick_agg_tile(n, f_p)      # Pass B row tile + padded N
    n_i = n_pad // tm

    # degrees precomputed once in the wrapper (hoisted out of the kernels)
    adj_f = adj.astype(f32)
    deg_in = jnp.maximum(jnp.sum(adj_f, axis=1, keepdims=True), 1.0)    # (n, 1)
    deg_out = jnp.maximum(jnp.sum(adj_f, axis=0, keepdims=True), 1.0)   # (1, n)
    rin = _pad2(lax.rsqrt(deg_in), n_pad, 1, fill=1.0)                  # (Np, 1)
    rout = _pad2(lax.rsqrt(deg_out).T, n_pad, 1, fill=1.0)              # (Np, 1)

    adj_p = _pad2(adj_f, n_pad, n_pad).astype(bf16)    # exact 0/1 in bf16
    feat_p = _pad2(feat.astype(f32), n_pad, fin_p)
    w_p = _pad2(params["w"].astype(f32), fin_p, f_p).astype(bf16)
    b_p = _pad2(params["b"].astype(f32), 1, f_p)
    gamma_p = _pad2(params["gamma"].astype(f32), 1, f_p)
    beta_p = _pad2(params["beta"].astype(f32), 1, f_p)
    alpha1 = params["alpha1"].astype(f32).reshape(1)
    alpha2 = params["alpha2"].astype(f32).reshape(1)
    seed = jnp.asarray(seed, jnp.int32).reshape(1)

    smem = pltpu.MemorySpace.SMEM
    cparams = pltpu.CompilerParams(dimension_semantics=("parallel",),
                                   vmem_limit_bytes=48 * 1024 * 1024)

    # ---- Pass A: dropout + x @ W (bf16 MXU) + rsqrt(deg_out) scaling ----
    tma = _row_tile(n_pad, per_row_bytes=2 * (fin_p * 4 + f_p * 2 + 4))
    xw = pl.pallas_call(
        _make_feat_kernel(float(p_drop), tma, fin_p),
        out_shape=jax.ShapeDtypeStruct((n_pad, f_p), bf16),
        grid=(n_pad // tma,),
        in_specs=[
            pl.BlockSpec(memory_space=smem),                   # seed (1,) int32
            pl.BlockSpec((tma, fin_p), lambda i: (i, 0)),      # x tile (f32)
            pl.BlockSpec((fin_p, f_p), lambda i: (0, 0)),      # W (bf16, resident)
            pl.BlockSpec((tma, 1), lambda i: (i, 0)),          # rsqrt(deg_out)
        ],
        out_specs=pl.BlockSpec((tma, f_p), lambda i: (i, 0)),
        compiler_params=cparams,
    )(seed, feat_p, w_p, rout)

    # ---- Pass B: aggregation (bf16 adj slab @ resident bf16 xw) + PReLU
    #      + per-row-tile BatchNorm partial statistics ----
    h_pre, psum, psumsq = pl.pallas_call(
        _make_agg_kernel(n, tm),
        out_shape=(
            jax.ShapeDtypeStruct((n_pad, f_p), f32),
            jax.ShapeDtypeStruct((n_i * 8, f_p), f32),
            jax.ShapeDtypeStruct((n_i * 8, f_p), f32),
        ),
        grid=(n_i,),
        in_specs=[
            pl.BlockSpec((tm, n_pad), lambda i: (i, 0)),       # adj row slab (bf16)
            pl.BlockSpec((n_pad, f_p), lambda i: (0, 0)),      # xw (bf16, resident)
            pl.BlockSpec((tm, 1), lambda i: (i, 0)),           # rsqrt(deg_in)
            pl.BlockSpec((1, f_p), lambda i: (0, 0)),          # bias
            pl.BlockSpec(memory_space=smem),                   # alpha1 (1,)
        ],
        out_specs=(
            pl.BlockSpec((tm, f_p), lambda i: (i, 0)),         # pre-BN h (f32)
            pl.BlockSpec((8, f_p), lambda i: (i, 0)),          # partial sums
            pl.BlockSpec((8, f_p), lambda i: (i, 0)),          # partial sumsq
        ),
        compiler_params=cparams,
    )(adj_p, xw, rin, b_p, alpha1)

    # tiny cross-row-tile reduction of BN partials + fold into scale/shift
    sum_vec = jnp.sum(psum.reshape(n_i, 8, f_p)[:, 0, :], axis=0, keepdims=True)
    sumsq_vec = jnp.sum(psumsq.reshape(n_i, 8, f_p)[:, 0, :], axis=0, keepdims=True)
    inv_n = 1.0 / float(n)
    mean = sum_vec * inv_n
    var = jnp.maximum(sumsq_vec * inv_n - mean * mean, 0.0)   # biased (training BN)
    scale = gamma_p * lax.rsqrt(var + eps)
    shift = beta_p - mean * scale

    # ---- Pass C: BatchNorm apply (one FMA) + outer PReLU ----
    tmc = _row_tile(n_pad, per_row_bytes=2 * (f_p * 4 + f_p * 4))
    out_p = pl.pallas_call(
        _out_kernel,
        out_shape=jax.ShapeDtypeStruct((n_pad, f_p), f32),
        grid=(n_pad // tmc,),
        in_specs=[
            pl.BlockSpec((tmc, f_p), lambda i: (i, 0)),        # pre-BN h
            pl.BlockSpec((1, f_p), lambda i: (0, 0)),          # scale
            pl.BlockSpec((1, f_p), lambda i: (0, 0)),          # shift
            pl.BlockSpec(memory_space=smem),                   # alpha2 (1,)
        ],
        out_specs=pl.BlockSpec((tmc, f_p), lambda i: (i, 0)),
        compiler_params=cparams,
    )(h_pre, scale, shift, alpha2)

    return out_p[:n, :fout]


# --------------------------------------------------------------------------
# Pure-JAX reference (dropout disabled) + param init
# --------------------------------------------------------------------------
def reference_forward(adj, feat, params, eps=1e-5):
    deg_in = jnp.maximum(adj.sum(1, keepdims=True), 1.0)
    deg_out = jnp.maximum(adj.sum(0, keepdims=True), 1.0)
    a_norm = adj / jnp.sqrt(deg_in) / jnp.sqrt(deg_out)
    h = a_norm @ (feat @ params["w"]) + params["b"]
    h = jnp.where(h > 0, h, params["alpha1"][0] * h)
    mean = h.mean(0, keepdims=True)
    var = ((h - mean) ** 2).mean(0, keepdims=True)
    h = (h - mean) / jnp.sqrt(var + eps) * params["gamma"] + params["beta"]
    return jnp.where(h > 0, h, params["alpha2"][0] * h)


def init_params(key, in_hidden, out_hidden):
    (kw,) = jax.random.split(key, 1)
    bound = (6.0 / (in_hidden + out_hidden)) ** 0.5        # xavier_uniform (DGL)
    w = jax.random.uniform(kw, (in_hidden, out_hidden), jnp.float32, -bound, bound)
    return {
        "w": w,
        "b": jnp.zeros((1, out_hidden), jnp.float32),        # GraphConv bias = 0
        "alpha1": jnp.full((1,), 0.25, jnp.float32),          # PReLU default
        "gamma": jnp.ones((1, out_hidden), jnp.float32),      # BatchNorm affine
        "beta": jnp.zeros((1, out_hidden), jnp.float32),
        "alpha2": jnp.full((1,), 0.25, jnp.float32),          # outer PReLU
    }


if __name__ == "__main__":
    N, IN_HIDDEN, OUT_HIDDEN, P1 = 200, 32, 16, 0.5

    root = jax.random.PRNGKey(0)
    k_adj, k_feat, k_param = jax.random.split(root, 3)

    # deterministic random graph (dense adjacency, adj[dst, src]) with self-loops
    adj = (jax.random.uniform(k_adj, (N, N)) < 0.05).astype(jnp.float32)
    adj = jnp.maximum(adj, jnp.eye(N, dtype=jnp.float32))

    feat = jax.random.normal(k_feat, (N, IN_HIDDEN), jnp.float32)
    params = init_params(k_param, IN_HIDDEN, OUT_HIDDEN)
    seed = jnp.array([42], dtype=jnp.int32)

    # numerical check of the deterministic path (dropout off); tolerance covers
    # the bf16 operands on the MXU path (accumulation stays f32).
    out_nodrop = encoder_forward(adj, feat, params, seed, p_drop=0.0)
    ref = reference_forward(adj, feat, params)
    out_nodrop = jax.block_until_ready(out_nodrop)
    assert out_nodrop.shape == (N, OUT_HIDDEN)
    assert jnp.allclose(out_nodrop, ref, atol=2e-2, rtol=2e-2), (
        "mismatch vs reference, max abs err = "
        f"{float(jnp.max(jnp.abs(out_nodrop - ref)))}")

    # full forward with dropout p1 (in-kernel counter-hash PRNG mask)
    out = encoder_forward(adj, feat, params, seed, p_drop=P1)
    out = jax.block_until_ready(out)
    assert out.shape == (N, OUT_HIDDEN) and bool(jnp.all(jnp.isfinite(out)))
    print("KERNEL_OK")
</pallas_src>

<mosaic_0001>
module attributes {stable_mosaic.version = 11 : i64} {
  func.func @kernel(%arg0: i32, %arg1: memref<1xi32, #tpu.memory_space<smem>>, %arg2: memref<256x128xf32, #tpu.memory_space<vmem>>, %arg3: memref<128x128xbf16, #tpu.memory_space<vmem>>, %arg4: memref<256x1xf32, #tpu.memory_space<vmem>>, %arg5: memref<256x128xbf16, #tpu.memory_space<vmem>>) attributes {dimension_semantics = [#tpu.dimension_semantics<parallel>], iteration_bounds = array<i64: 1>, scalar_prefetch = 0 : i64, scratch_operands = 0 : i64, tpu.core_type = #tpu.core_type<tc>, window_params = [{transform_indices = @transform_0, window_bounds = array<i64: 1>}, {transform_indices = @transform_1, window_bounds = array<i64: 256, 128>}, {pipeline_mode = #tpu.pipeline_mode<synchronous>, transform_indices = @transform_2, window_bounds = array<i64: 128, 128>}, {transform_indices = @transform_3, window_bounds = array<i64: 256, 1>}, {transform_indices = @transform_4, window_bounds = array<i64: 256, 128>}]} {
    %c0 = arith.constant 0 : index
    %c0_0 = arith.constant 0 : index
    %0 = vector.load %arg2[%c0, %c0_0] : memref<256x128xf32, #tpu.memory_space<vmem>>, vector<256x128xf32>
    %1 = arith.truncf %0 : vector<256x128xf32> to vector<256x128xbf16>
    %c0_1 = arith.constant 0 : index
    %c0_2 = arith.constant 0 : index
    %2 = vector.load %arg3[%c0_1, %c0_2] : memref<128x128xbf16, #tpu.memory_space<vmem>>, vector<128x128xbf16>
    %cst = arith.constant dense<0.000000e+00> : vector<256x128xf32>
    %3 = tpu.matmul %1, %2, %cst {dimension_numbers = #tpu.dot_dimension_numbers<[1], [0], [0], [1], [0, 0, 1, 1], [], []>} : vector<256x128xbf16>, vector<128x128xbf16>, vector<256x128xf32> -> vector<256x128xf32>
    %c0_3 = arith.constant 0 : index
    %c0_4 = arith.constant 0 : index
    %4 = vector.load %arg4[%c0_3, %c0_4] : memref<256x1xf32, #tpu.memory_space<vmem>>, vector<256x1xf32>
    %5 = vector.broadcast %4 : vector<256x1xf32> to vector<256x128xf32>
    %6 = arith.mulf %3, %5 : vector<256x128xf32>
    %7 = arith.truncf %6 : vector<256x128xf32> to vector<256x128xbf16>
    %c0_5 = arith.constant 0 : index
    %c0_6 = arith.constant 0 : index
    %8 = vector.load %arg5[%c0_5, %c0_6] : memref<256x128xbf16, #tpu.memory_space<vmem>>, vector<256x128xbf16>
    tpu.vector_store %arg5[%c0_5, %c0_6], %7 {strides = array<i32>} : memref<256x128xbf16, #tpu.memory_space<vmem>>, vector<256x128xbf16>,
    return
  }
  func.func @transform_0(%arg0: i32) -> i32 {
    %c0_i32 = arith.constant 0 : i32
    %c0_i32_0 = arith.constant 0 : i32
    return %c0_i32 : i32
  }
  func.func @transform_1(%arg0: i32) -> (i32, i32) {
    %c0_i32 = arith.constant 0 : i32
    %c0_i32_0 = arith.constant 0 : i32
    return %arg0, %c0_i32 : i32, i32
  }
  func.func @transform_2(%arg0: i32) -> (i32, i32) {
    %c0_i32 = arith.constant 0 : i32
    %c0_i32_0 = arith.constant 0 : i32
    %c0_i32_1 = arith.constant 0 : i32
    return %c0_i32, %c0_i32_0 : i32, i32
  }
  func.func @transform_3(%arg0: i32) -> (i32, i32) {
    %c0_i32 = arith.constant 0 : i32
    %c0_i32_0 = arith.constant 0 : i32
    return %arg0, %c0_i32 : i32, i32
  }
  func.func @transform_4(%arg0: i32) -> (i32, i32) {
    %c0_i32 = arith.constant 0 : i32
    %c0_i32_0 = arith.constant 0 : i32
    return %arg0, %c0_i32 : i32, i32
  }
}

module attributes {stable_mosaic.version = 11 : i64} {
  func.func @kernel(%arg0: i32, %arg1: memref<128x256xbf16, #tpu.memory_space<vmem>>, %arg2: memref<256x128xbf16, #tpu.memory_space<vmem>>, %arg3: memref<128x1xf32, #tpu.memory_space<vmem>>, %arg4: memref<1x128xf32, #tpu.memory_space<vmem>>, %arg5: memref<1xf32, #tpu.memory_space<smem>>, %arg6: memref<128x128xf32, #tpu.memory_space<vmem>>, %arg7: memref<8x128xf32, #tpu.memory_space<vmem>>, %arg8: memref<8x128xf32, #tpu.memory_space<vmem>>) attributes {dimension_semantics = [#tpu.dimension_semantics<parallel>], iteration_bounds = array<i64: 2>, scalar_prefetch = 0 : i64, scratch_operands = 0 : i64, tpu.core_type = #tpu.core_type<tc>, window_params = [{transform_indices = @transform_0, window_bounds = array<i64: 128, 256>}, {pipeline_mode = #tpu.pipeline_mode<synchronous>, transform_indices = @transform_1, window_bounds = array<i64: 256, 128>}, {transform_indices = @transform_2, window_bounds = array<i64: 128, 1>}, {pipeline_mode = #tpu.pipeline_mode<synchronous>, transform_indices = @transform_3, window_bounds = array<i64: 1, 128>}, {transform_indices = @transform_4, window_bounds = array<i64: 1>}, {transform_indices = @transform_5, window_bounds = array<i64: 128, 128>}, {transform_indices = @transform_6, window_bounds = array<i64: 8, 128>}, {transform_indices = @transform_7, window_bounds = array<i64: 8, 128>}]} {
    %c0 = arith.constant 0 : index
    %c0_0 = arith.constant 0 : index
    %0 = vector.load %arg1[%c0, %c0_0] : memref<128x256xbf16, #tpu.memory_space<vmem>>, vector<128x256xbf16>
    %c0_1 = arith.constant 0 : index
    %c0_2 = arith.constant 0 : index
    %1 = vector.load %arg2[%c0_1, %c0_2] : memref<256x128xbf16, #tpu.memory_space<vmem>>, vector<256x128xbf16>
    %cst = arith.constant dense<0.000000e+00> : vector<128x128xf32>
    %2 = tpu.matmul %0, %1, %cst {dimension_numbers = #tpu.dot_dimension_numbers<[1], [0], [0], [1], [0, 0, 1, 1], [], []>} : vector<128x256xbf16>, vector<256x128xbf16>, vector<128x128xf32> -> vector<128x128xf32>
    %c0_3 = arith.constant 0 : index
    %c0_4 = arith.constant 0 : index
    %3 = vector.load %arg3[%c0_3, %c0_4] : memref<128x1xf32, #tpu.memory_space<vmem>>, vector<128x1xf32>
    %4 = vector.broadcast %3 : vector<128x1xf32> to vector<128x128xf32>
    %5 = arith.mulf %2, %4 : vector<128x128xf32>
    %c0_5 = arith.constant 0 : index
    %c0_6 = arith.constant 0 : index
    %6 = vector.load %arg4[%c0_5, %c0_6] : memref<1x128xf32, #tpu.memory_space<vmem>>, vector<1x128xf32>
    %7 = vector.broadcast %6 : vector<1x128xf32> to vector<128x128xf32>
    %8 = arith.addf %5, %7 : vector<128x128xf32>
    %c0_7 = arith.constant 0 : index
    %9 = memref.load %arg5[%c0_7] : memref<1xf32, #tpu.memory_space<smem>>
    %cst_8 = arith.constant 0.000000e+00 : f32
    %10 = vector.broadcast %cst_8 : f32 to vector<128x128xf32>
    %11 = arith.cmpf ogt, %8, %10 : vector<128x128xf32>
    %12 = vector.broadcast %9 : f32 to vector<128x128xf32>
    %13 = arith.mulf %12, %8 : vector<128x128xf32>
    %14 = arith.select %11, %8, %13 : vector<128x128xi1>, vector<128x128xf32>
    %c0_9 = arith.constant 0 : index
    %c0_10 = arith.constant 0 : index
    %15 = vector.load %arg6[%c0_9, %c0_10] : memref<128x128xf32, #tpu.memory_space<vmem>>, vector<128x128xf32>
    tpu.vector_store %arg6[%c0_9, %c0_10], %14 {strides = array<i32>} : memref<128x128xf32, #tpu.memory_space<vmem>>, vector<128x128xf32>,
    %c128_i32 = arith.constant 128 : i32
    %16 = arith.muli %arg0, %c128_i32 : i32
    %17 = tpu.iota {dimensions = array<i32: 0>} : vector<128x128xi32>
    %18 = vector.broadcast %16 : i32 to vector<128x128xi32>
    %19 = arith.addi %18, %17 : vector<128x128xi32>
    %c200_i32 = arith.constant 200 : i32
    %20 = vector.broadcast %c200_i32 : i32 to vector<128x128xi32>
    %21 = arith.cmpi slt, %19, %20 : vector<128x128xi32>
    %cst_11 = arith.constant 0.000000e+00 : f32
    %22 = vector.broadcast %cst_11 : f32 to vector<128x128xf32>
    %23 = arith.select %21, %14, %22 : vector<128x128xi1>, vector<128x128xf32>
    %cst_12 = arith.constant dense<0.000000e+00> : vector<128xf32>
    %24 = vector.multi_reduction <add>, %23, %cst_12 [0] : vector<128x128xf32> to vector<128xf32>
    %25 = vector.shape_cast %24 : vector<128xf32> to vector<1x128xf32>
    %26 = arith.mulf %23, %23 : vector<128x128xf32>
    %cst_13 = arith.constant dense<0.000000e+00> : vector<128xf32>
    %27 = vector.multi_reduction <add>, %26, %cst_13 [0] : vector<128x128xf32> to vector<128xf32>
    %28 = vector.shape_cast %27 : vector<128xf32> to vector<1x128xf32>
    %29 = vector.shape_cast %25 : vector<1x128xf32> to vector<1x128xf32>
    %30 = vector.broadcast %29 : vector<1x128xf32> to vector<8x128xf32>
    %c0_14 = arith.constant 0 : index
    %c0_15 = arith.constant 0 : index
    %31 = vector.load %arg7[%c0_14, %c0_15] : memref<8x128xf32, #tpu.memory_space<vmem>>, vector<8x128xf32>
    tpu.vector_store %arg7[%c0_14, %c0_15], %30 {strides = array<i32>} : memref<8x128xf32, #tpu.memory_space<vmem>>, vector<8x128xf32>,
    %32 = vector.shape_cast %28 : vector<1x128xf32> to vector<1x128xf32>
    %33 = vector.broadcast %32 : vector<1x128xf32> to vector<8x128xf32>
    %c0_16 = arith.constant 0 : index
    %c0_17 = arith.constant 0 : index
    %34 = vector.load %arg8[%c0_16, %c0_17] : memref<8x128xf32, #tpu.memory_space<vmem>>, vector<8x128xf32>
    tpu.vector_store %arg8[%c0_16, %c0_17], %33 {strides = array<i32>} : memref<8x128xf32, #tpu.memory_space<vmem>>, vector<8x128xf32>,
    return
  }
  func.func @transform_0(%arg0: i32) -> (i32, i32) {
    %c0_i32 = arith.constant 0 : i32
    %c0_i32_0 = arith.constant 0 : i32
    return %arg0, %c0_i32 : i32, i32
  }
  func.func @transform_1(%arg0: i32) -> (i32, i32) {
    %c0_i32 = arith.constant 0 : i32
    %c0_i32_0 = arith.constant 0 : i32
    %c0_i32_1 = arith.constant 0 : i32
    return %c0_i32, %c0_i32_0 : i32, i32
  }
  func.func @transform_2(%arg0: i32) -> (i32, i32) {
    %c0_i32 = arith.constant 0 : i32
    %c0_i32_0 = arith.constant 0 : i32
    return %arg0, %c0_i32 : i32, i32
  }
  func.func @transform_3(%arg0: i32) -> (i32, i32) {
    %c0_i32 = arith.constant 0 : i32
    %c0_i32_0 = arith.constant 0 : i32
    %c0_i32_1 = arith.constant 0 : i32
    return %c0_i32, %c0_i32_0 : i32, i32
  }
  func.func @transform_4(%arg0: i32) -> i32 {
    %c0_i32 = arith.constant 0 : i32
    %c0_i32_0 = arith.constant 0 : i32
    return %c0_i32 : i32
  }
  func.func @transform_5(%arg0: i32) -> (i32, i32) {
    %c0_i32 = arith.constant 0 : i32
    %c0_i32_0 = arith.constant 0 : i32
    return %arg0, %c0_i32 : i32, i32
  }
  func.func @transform_6(%arg0: i32) -> (i32, i32) {
    %c0_i32 = arith.constant 0 : i32
    %c0_i32_0 = arith.constant 0 : i32
    return %arg0, %c0_i32 : i32, i32
  }
  func.func @transform_7(%arg0: i32) -> (i32, i32) {
    %c0_i32 = arith.constant 0 : i32
    %c0_i32_0 = arith.constant 0 : i32
    return %arg0, %c0_i32 : i32, i32
  }
}

module attributes {stable_mosaic.version = 11 : i64} {
  func.func @_out_kernel(%arg0: i32, %arg1: memref<256x128xf32, #tpu.memory_space<vmem>>, %arg2: memref<1x128xf32, #tpu.memory_space<vmem>>, %arg3: memref<1x128xf32, #tpu.memory_space<vmem>>, %arg4: memref<1xf32, #tpu.memory_space<smem>>, %arg5: memref<256x128xf32, #tpu.memory_space<vmem>>) attributes {dimension_semantics = [#tpu.dimension_semantics<parallel>], iteration_bounds = array<i64: 1>, scalar_prefetch = 0 : i64, scratch_operands = 0 : i64, tpu.core_type = #tpu.core_type<tc>, window_params = [{transform_indices = @transform_0, window_bounds = array<i64: 256, 128>}, {pipeline_mode = #tpu.pipeline_mode<synchronous>, transform_indices = @transform_1, window_bounds = array<i64: 1, 128>}, {pipeline_mode = #tpu.pipeline_mode<synchronous>, transform_indices = @transform_2, window_bounds = array<i64: 1, 128>}, {transform_indices = @transform_3, window_bounds = array<i64: 1>}, {transform_indices = @transform_4, window_bounds = array<i64: 256, 128>}]} {
    %c0 = arith.constant 0 : index
    %c0_0 = arith.constant 0 : index
    %0 = vector.load %arg1[%c0, %c0_0] : memref<256x128xf32, #tpu.memory_space<vmem>>, vector<256x128xf32>
    %c0_1 = arith.constant 0 : index
    %c0_2 = arith.constant 0 : index
    %1 = vector.load %arg2[%c0_1, %c0_2] : memref<1x128xf32, #tpu.memory_space<vmem>>, vector<1x128xf32>
    %2 = vector.broadcast %1 : vector<1x128xf32> to vector<256x128xf32>
    %3 = arith.mulf %0, %2 : vector<256x128xf32>
    %c0_3 = arith.constant 0 : index
    %c0_4 = arith.constant 0 : index
    %4 = vector.load %arg3[%c0_3, %c0_4] : memref<1x128xf32, #tpu.memory_space<vmem>>, vector<1x128xf32>
    %5 = vector.broadcast %4 : vector<1x128xf32> to vector<256x128xf32>
    %6 = arith.addf %3, %5 : vector<256x128xf32>
    %c0_5 = arith.constant 0 : index
    %7 = memref.load %arg4[%c0_5] : memref<1xf32, #tpu.memory_space<smem>>
    %cst = arith.constant 0.000000e+00 : f32
    %8 = vector.broadcast %cst : f32 to vector<256x128xf32>
    %9 = arith.cmpf ogt, %6, %8 : vector<256x128xf32>
    %10 = vector.broadcast %7 : f32 to vector<256x128xf32>
    %11 = arith.mulf %10, %6 : vector<256x128xf32>
    %12 = arith.select %9, %6, %11 : vector<256x128xi1>, vector<256x128xf32>
    %c0_6 = arith.constant 0 : index
    %c0_7 = arith.constant 0 : index
    %13 = vector.load %arg5[%c0_6, %c0_7] : memref<256x128xf32, #tpu.memory_space<vmem>>, vector<256x128xf32>
    tpu.vector_store %arg5[%c0_6, %c0_7], %12 {strides = array<i32>} : memref<256x128xf32, #tpu.memory_space<vmem>>, vector<256x128xf32>,
    return
  }
  func.func @transform_0(%arg0: i32) -> (i32, i32) {
    %c0_i32 = arith.constant 0 : i32
    %c0_i32_0 = arith.constant 0 : i32
    return %arg0, %c0_i32 : i32, i32
  }
  func.func @transform_1(%arg0: i32) -> (i32, i32) {
    %c0_i32 = arith.constant 0 : i32
    %c0_i32_0 = arith.constant 0 : i32
    %c0_i32_1 = arith.constant 0 : i32
    return %c0_i32, %c0_i32_0 : i32, i32
  }
  func.func @transform_2(%arg0: i32) -> (i32, i32) {
    %c0_i32 = arith.constant 0 : i32
    %c0_i32_0 = arith.constant 0 : i32
    %c0_i32_1 = arith.constant 0 : i32
    return %c0_i32, %c0_i32_0 : i32, i32
  }
  func.func @transform_3(%arg0: i32) -> i32 {
    %c0_i32 = arith.constant 0 : i32
    %c0_i32_0 = arith.constant 0 : i32
    return %c0_i32 : i32
  }
  func.func @transform_4(%arg0: i32) -> (i32, i32) {
    %c0_i32 = arith.constant 0 : i32
    %c0_i32_0 = arith.constant 0 : i32
    return %arg0, %c0_i32 : i32, i32
  }
}

</mosaic_0001>

<llo_original>
// kernel: encoder_forward.5
$region0: #{encoder_forward.5}
  #allocation0 [shape = 'u32[]', space=smem, size = 0x4, offset = 0x4, fixed_abs, tag = 'smem constant byte address 0x4 - core index']
  #allocation1 [shape = 'u32[144,128]{1,0:T(1,128)}', space=vmem, size = 0x12000, scoped, tag = 'internal scratch']
  #allocation2 [shape = 'f32[1]{0:T(128)S(6)}', space=smem, size = 0x200, scoped, tag = 'scoped memory for encoder_forward.5']
  %s0 = inlined_call_operand.vmem [shape: f32[256,128], index: 0, kind: input, shape index: {}]
  %s1 = inlined_call_operand.vmem [shape: f32[1,128], index: 1, kind: input, shape index: {}]
  %s2 = inlined_call_operand.vmem [shape: f32[1,128], index: 2, kind: input, shape index: {}]
  %s3 = inlined_call_operand.<no memory space> [shape: f32[1], index: 3, kind: input, shape index: {}]
  %s4 = inlined_call_operand.vmem [shape: f32[256,128], index: 4, kind: output, shape index: {}]
  %s5 = sld [smem:[#allocation0]]
  $region26: #{encoder_forward.5} parent=0
    _
  %s7 = ssub.s32 1, %s5
  %s8 = scalar_select 0, %s7, %s5
  %9 = sst [smem:[#allocation2]] %s3
  // Predicated region
  $region2: #{encoder_forward.5} parent=0 // pred_check
    _
  $region3: #{encoder_forward.5} parent=0 // pred_check_branch
    %11 = sbr.rel (0) target = $region5
  $region4: #{encoder_forward.5} parent=0 // pred_region
    _
  $region5: #{encoder_forward.5} parent=0 // pred_fallthru
    _
  // Predicated region
  $region6: #{encoder_forward.5} parent=0 // pred_check
    _
  $region7: #{encoder_forward.5} parent=0 // pred_check_branch
    %13 = sbr.rel (0) target = $region9
  $region8: #{encoder_forward.5} parent=0 // pred_region
    _
  $region9: #{encoder_forward.5} parent=0 // pred_fallthru
    _
  // Predicated region
  $region10: #{encoder_forward.5} parent=0 // pred_check
    _
  $region11: #{encoder_forward.5} parent=0 // pred_check_branch
    %15 = sbr.rel (0) target = $region13
  $region12: #{encoder_forward.5} parent=0 // pred_region
    _
  $region13: #{encoder_forward.5} parent=0 // pred_fallthru
    _
  // Predicated region
  $region14: #{encoder_forward.5} parent=0 // pred_check
    _
  $region15: #{encoder_forward.5} parent=0 // pred_check_branch
    %17 = sbr.rel (0) target = $region17
  $region16: #{encoder_forward.5} parent=0 // pred_region
    _
  $region17: #{encoder_forward.5} parent=0 // pred_fallthru
    _
  %v18 = vld [vmem:[%s0] sm:$0xff]
  %v19 = vld [vmem:[%s0 + $0x8] sm:$0xff]
  %v20 = vld [vmem:[%s0 + $0x10] sm:$0xff]
  %v21 = vld [vmem:[%s0 + $0x18] sm:$0xff]
  %v22 = vld [vmem:[%s0 + $0x20] sm:$0xff]
  %v23 = vld [vmem:[%s0 + $0x28] sm:$0xff]
  %v24 = vld [vmem:[%s0 + $0x30] sm:$0xff]
  %v25 = vld [vmem:[%s0 + $0x38] sm:$0xff]
  %v26 = vld [vmem:[%s0 + $0x40] sm:$0xff]
  %v27 = vld [vmem:[%s0 + $0x48] sm:$0xff]
  %v28 = vld [vmem:[%s0 + $0x50] sm:$0xff]
  %v29 = vld [vmem:[%s0 + $0x58] sm:$0xff]
  %v30 = vld [vmem:[%s0 + $0x60] sm:$0xff]
  %v31 = vld [vmem:[%s0 + $0x68] sm:$0xff]
  %v32 = vld [vmem:[%s0 + $0x70] sm:$0xff]
  %v33 = vld [vmem:[%s0 + $0x78] sm:$0xff]
  %v34 = vld [vmem:[%s0 + $0x80] sm:$0xff]
  %v35 = vld [vmem:[%s0 + $0x88] sm:$0xff]
  %v36 = vld [vmem:[%s0 + $0x90] sm:$0xff]
  %v37 = vld [vmem:[%s0 + $0x98] sm:$0xff]
  %v38 = vld [vmem:[%s0 + $0xa0] sm:$0xff]
  %v39 = vld [vmem:[%s0 + $0xa8] sm:$0xff]
  %v40 = vld [vmem:[%s0 + $0xb0] sm:$0xff]
  %v41 = vld [vmem:[%s0 + $0xb8] sm:$0xff]
  %v42 = vld [vmem:[%s0 + $0xc0] sm:$0xff]
  %v43 = vld [vmem:[%s0 + $0xc8] sm:$0xff]
  %v44 = vld [vmem:[%s0 + $0xd0] sm:$0xff]
  %v45 = vld [vmem:[%s0 + $0xd8] sm:$0xff]
  %v46 = vld [vmem:[%s0 + $0xe0] sm:$0xff]
  %v47 = vld [vmem:[%s0 + $0xe8] sm:$0xff]
  %v48 = vld [vmem:[%s0 + $0xf0] sm:$0xff]
  %v49 = vld [vmem:[%s0 + $0xf8] sm:$0xff]
  %v50 = vld [vmem:[%s1] sm:$0x1]
  %v52 = vlaneseq
  %v53 = vshrl.u32 %v52, 7
  %v54 = vsub.s32 0, %v53
  %v55 = vrot.slane %v50, %v54
  %v57 = vmul.f32 %v18, %v55
  %v58 = vmul.f32 %v19, %v55
  %v59 = vmul.f32 %v20, %v55
  %v60 = vmul.f32 %v21, %v55
  %v61 = vmul.f32 %v22, %v55
  %v62 = vmul.f32 %v23, %v55
  %v63 = vmul.f32 %v24, %v55
  %v64 = vmul.f32 %v25, %v55
  %v65 = vmul.f32 %v26, %v55
  %v66 = vmul.f32 %v27, %v55
  %v67 = vmul.f32 %v28, %v55
  %v68 = vmul.f32 %v29, %v55
  %v69 = vmul.f32 %v30, %v55
  %v70 = vmul.f32 %v31, %v55
  %v71 = vmul.f32 %v32, %v55
  %v72 = vmul.f32 %v33, %v55
  %v73 = vmul.f32 %v34, %v55
  %v74 = vmul.f32 %v35, %v55
  %v75 = vmul.f32 %v36, %v55
  %v76 = vmul.f32 %v37, %v55
  %v77 = vmul.f32 %v38, %v55
  %v78 = vmul.f32 %v39, %v55
  %v79 = vmul.f32 %v40, %v55
  %v80 = vmul.f32 %v41, %v55
  %v81 = vmul.f32 %v42, %v55
  %v82 = vmul.f32 %v43, %v55
  %v83 = vmul.f32 %v44, %v55
  %v84 = vmul.f32 %v45, %v55
  %v85 = vmul.f32 %v46, %v55
  %v86 = vmul.f32 %v47, %v55
  %v87 = vmul.f32 %v48, %v55
  %v88 = vmul.f32 %v49, %v55
  %v89 = vld [vmem:[%s2] sm:$0x1]
  %v91 = vlaneseq
  %v92 = vshrl.u32 %v91, 7
  %v93 = vsub.s32 0, %v92
  %v94 = vrot.slane %v89, %v93
  %v96 = vadd.f32 %v57, %v94
  %v97 = vadd.f32 %v58, %v94
  %v98 = vadd.f32 %v59, %v94
  %v99 = vadd.f32 %v60, %v94
  %v100 = vadd.f32 %v61, %v94
  %v101 = vadd.f32 %v62, %v94
  %v102 = vadd.f32 %v63, %v94
  %v103 = vadd.f32 %v64, %v94
  %v104 = vadd.f32 %v65, %v94
  %v105 = vadd.f32 %v66, %v94
  %v106 = vadd.f32 %v67, %v94
  %v107 = vadd.f32 %v68, %v94
  %v108 = vadd.f32 %v69, %v94
  %v109 = vadd.f32 %v70, %v94
  %v110 = vadd.f32 %v71, %v94
  %v111 = vadd.f32 %v72, %v94
  %v112 = vadd.f32 %v73, %v94
  %v113 = vadd.f32 %v74, %v94
  %v114 = vadd.f32 %v75, %v94
  %v115 = vadd.f32 %v76, %v94
  %v116 = vadd.f32 %v77, %v94
  %v117 = vadd.f32 %v78, %v94
  %v118 = vadd.f32 %v79, %v94
  %v119 = vadd.f32 %v80, %v94
  %v120 = vadd.f32 %v81, %v94
  %v121 = vadd.f32 %v82, %v94
  %v122 = vadd.f32 %v83, %v94
  %v123 = vadd.f32 %v84, %v94
  %v124 = vadd.f32 %v85, %v94
  %v125 = vadd.f32 %v86, %v94
  %v126 = vadd.f32 %v87, %v94
  %v127 = vadd.f32 %v88, %v94
  %s128 = sld [smem:[#allocation2]]
  %vm129 = vcmp.gt.f32.partialorder %v96, 0.0
  %vm130 = vcmp.gt.f32.partialorder %v97, 0.0
  %vm131 = vcmp.gt.f32.partialorder %v98, 0.0
  %vm132 = vcmp.gt.f32.partialorder %v99, 0.0
  %vm133 = vcmp.gt.f32.partialorder %v100, 0.0
  %vm134 = vcmp.gt.f32.partialorder %v101, 0.0
  %vm135 = vcmp.gt.f32.partialorder %v102, 0.0
  %vm136 = vcmp.gt.f32.partialorder %v103, 0.0
  %vm137 = vcmp.gt.f32.partialorder %v104, 0.0
  %vm138 = vcmp.gt.f32.partialorder %v105, 0.0
  %vm139 = vcmp.gt.f32.partialorder %v106, 0.0
  %vm140 = vcmp.gt.f32.partialorder %v107, 0.0
  %vm141 = vcmp.gt.f32.partialorder %v108, 0.0
  %vm142 = vcmp.gt.f32.partialorder %v109, 0.0
  %vm143 = vcmp.gt.f32.partialorder %v110, 0.0
  %vm144 = vcmp.gt.f32.partialorder %v111, 0.0
  %vm145 = vcmp.gt.f32.partialorder %v112, 0.0
  %vm146 = vcmp.gt.f32.partialorder %v113, 0.0
  %vm147 = vcmp.gt.f32.partialorder %v114, 0.0
  %vm148 = vcmp.gt.f32.partialorder %v115, 0.0
  %vm149 = vcmp.gt.f32.partialorder %v116, 0.0
  %vm150 = vcmp.gt.f32.partialorder %v117, 0.0
  %vm151 = vcmp.gt.f32.partialorder %v118, 0.0
  %vm152 = vcmp.gt.f32.partialorder %v119, 0.0
  %vm153 = vcmp.gt.f32.partialorder %v120, 0.0
  %vm154 = vcmp.gt.f32.partialorder %v121, 0.0
  %vm155 = vcmp.gt.f32.partialorder %v122, 0.0
  %vm156 = vcmp.gt.f32.partialorder %v123, 0.0
  %vm157 = vcmp.gt.f32.partialorder %v124, 0.0
  %vm158 = vcmp.gt.f32.partialorder %v125, 0.0
  %vm159 = vcmp.gt.f32.partialorder %v126, 0.0
  %vm160 = vcmp.gt.f32.partialorder %v127, 0.0
  %v161 = vstv %s128
  %v162 = vmul.f32 %v161, %v96
  %v163 = vmul.f32 %v161, %v97
  %v164 = vmul.f32 %v161, %v98
  %v165 = vmul.f32 %v161, %v99
  %v166 = vmul.f32 %v161, %v100
  %v167 = vmul.f32 %v161, %v101
  %v168 = vmul.f32 %v161, %v102
  %v169 = vmul.f32 %v161, %v103
  %v170 = vmul.f32 %v161, %v104
  %v171 = vmul.f32 %v161, %v105
  %v172 = vmul.f32 %v161, %v106
  %v173 = vmul.f32 %v161, %v107
  %v174 = vmul.f32 %v161, %v108
  %v175 = vmul.f32 %v161, %v109
  %v176 = vmul.f32 %v161, %v110
  %v177 = vmul.f32 %v161, %v111
  %v178 = vmul.f32 %v161, %v112
  %v179 = vmul.f32 %v161, %v113
  %v180 = vmul.f32 %v161, %v114
  %v181 = vmul.f32 %v161, %v115
  %v182 = vmul.f32 %v161, %v116
  %v183 = vmul.f32 %v161, %v117
  %v184 = vmul.f32 %v161, %v118
  %v185 = vmul.f32 %v161, %v119
  %v186 = vmul.f32 %v161, %v120
  %v187 = vmul.f32 %v161, %v121
  %v188 = vmul.f32 %v161, %v122
  %v189 = vmul.f32 %v161, %v123
  %v190 = vmul.f32 %v161, %v124
  %v191 = vmul.f32 %v161, %v125
  %v192 = vmul.f32 %v161, %v126
  %v193 = vmul.f32 %v161, %v127
  %v194 = vsel %vm129, %v96, %v162
  %v195 = vsel %vm130, %v97, %v163
  %v196 = vsel %vm131, %v98, %v164
  %v197 = vsel %vm132, %v99, %v165
  %v198 = vsel %vm133, %v100, %v166
  %v199 = vsel %vm134, %v101, %v167
  %v200 = vsel %vm135, %v102, %v168
  %v201 = vsel %vm136, %v103, %v169
  %v202 = vsel %vm137, %v104, %v170
  %v203 = vsel %vm138, %v105, %v171
  %v204 = vsel %vm139, %v106, %v172
  %v205 = vsel %vm140, %v107, %v173
  %v206 = vsel %vm141, %v108, %v174
  %v207 = vsel %vm142, %v109, %v175
  %v208 = vsel %vm143, %v110, %v176
  %v209 = vsel %vm144, %v111, %v177
  %v210 = vsel %vm145, %v112, %v178
  %v211 = vsel %vm146, %v113, %v179
  %v212 = vsel %vm147, %v114, %v180
  %v213 = vsel %vm148, %v115, %v181
  %v214 = vsel %vm149, %v116, %v182
  %v215 = vsel %vm150, %v117, %v183
  %v216 = vsel %vm151, %v118, %v184
  %v217 = vsel %vm152, %v119, %v185
  %v218 = vsel %vm153, %v120, %v186
  %v219 = vsel %vm154, %v121, %v187
  %v220 = vsel %vm155, %v122, %v188
  %v221 = vsel %vm156, %v123, %v189
  %v222 = vsel %vm157, %v124, %v190
  %v223 = vsel %vm158, %v125, %v191
  %v224 = vsel %vm159, %v126, %v192
  %v225 = vsel %vm160, %v127, %v193
  %226 = vst [vmem:[%s4] sm:$0xff] %v194
  %227 = vst [vmem:[%s4 + $0x8] sm:$0xff] %v195
  %228 = vst [vmem:[%s4 + $0x10] sm:$0xff] %v196
  %229 = vst [vmem:[%s4 + $0x18] sm:$0xff] %v197
  %230 = vst [vmem:[%s4 + $0x20] sm:$0xff] %v198
  %231 = vst [vmem:[%s4 + $0x28] sm:$0xff] %v199
  %232 = vst [vmem:[%s4 + $0x30] sm:$0xff] %v200
  %233 = vst [vmem:[%s4 + $0x38] sm:$0xff] %v201
  %234 = vst [vmem:[%s4 + $0x40] sm:$0xff] %v202
  %235 = vst [vmem:[%s4 + $0x48] sm:$0xff] %v203
  %236 = vst [vmem:[%s4 + $0x50] sm:$0xff] %v204
  %237 = vst [vmem:[%s4 + $0x58] sm:$0xff] %v205
  %238 = vst [vmem:[%s4 + $0x60] sm:$0xff] %v206
  %239 = vst [vmem:[%s4 + $0x68] sm:$0xff] %v207
  %240 = vst [vmem:[%s4 + $0x70] sm:$0xff] %v208
  %241 = vst [vmem:[%s4 + $0x78] sm:$0xff] %v209
  %242 = vst [vmem:[%s4 + $0x80] sm:$0xff] %v210
  %243 = vst [vmem:[%s4 + $0x88] sm:$0xff] %v211
  %244 = vst [vmem:[%s4 + $0x90] sm:$0xff] %v212
  %245 = vst [vmem:[%s4 + $0x98] sm:$0xff] %v213
  %246 = vst [vmem:[%s4 + $0xa0] sm:$0xff] %v214
  %247 = vst [vmem:[%s4 + $0xa8] sm:$0xff] %v215
  %248 = vst [vmem:[%s4 + $0xb0] sm:$0xff] %v216
  %249 = vst [vmem:[%s4 + $0xb8] sm:$0xff] %v217
  %250 = vst [vmem:[%s4 + $0xc0] sm:$0xff] %v218
  %251 = vst [vmem:[%s4 + $0xc8] sm:$0xff] %v219
  %252 = vst [vmem:[%s4 + $0xd0] sm:$0xff] %v220
  %253 = vst [vmem:[%s4 + $0xd8] sm:$0xff] %v221
  %254 = vst [vmem:[%s4 + $0xe0] sm:$0xff] %v222
  %255 = vst [vmem:[%s4 + $0xe8] sm:$0xff] %v223
  %256 = vst [vmem:[%s4 + $0xf0] sm:$0xff] %v224
  %257 = vst [vmem:[%s4 + $0xf8] sm:$0xff] %v225
  // Predicated region
  $region18: #{encoder_forward.5} parent=0 // pred_check
    _
  $region19: #{encoder_forward.5} parent=0 // pred_check_branch
    %259 = sbr.rel (0) target = $region21
  $region20: #{encoder_forward.5} parent=0 // pred_region
    _
  $region21: #{encoder_forward.5} parent=0 // pred_fallthru
    _
  // Predicated region
  $region22: #{encoder_forward.5} parent=0 // pred_check
    _
  $region23: #{encoder_forward.5} parent=0 // pred_check_branch
    %261 = sbr.rel (0) target = $region25
  $region24: #{encoder_forward.5} parent=0 // pred_region
    _
  $region25: #{encoder_forward.5} parent=0 // pred_fallthru
    _

// kernel: encoder_forward.4
$region0: #{encoder_forward.4}
  #allocation0 [shape = 'u32[]', space=smem, size = 0x4, offset = 0x4, fixed_abs, tag = 'smem constant byte address 0x4 - core index']
  #allocation1 [shape = 'u32[144,128]{1,0:T(1,128)}', space=vmem, size = 0x12000, scoped, tag = 'internal scratch']
  #allocation2 [shape = 'f32[1]{0:T(128)S(6)}', space=smem, size = 0x200, scoped, tag = 'scoped memory for encoder_forward.4']
  %s0 = inlined_call_operand.vmem [shape: bf16[256,256], index: 0, kind: input, shape index: {}]
  %s1 = inlined_call_operand.vmem [shape: bf16[256,128], index: 1, kind: input, shape index: {}]
  %s2 = inlined_call_operand.vmem [shape: f32[256,1], index: 2, kind: input, shape index: {}]
  %s3 = inlined_call_operand.vmem [shape: f32[1,128], index: 3, kind: input, shape index: {}]
  %s4 = inlined_call_operand.<no memory space> [shape: f32[1], index: 4, kind: input, shape index: {}]
  %s5 = inlined_call_operand.vmem [shape: f32[256,128], index: 5, kind: output, shape index: {0}]
  %s6 = inlined_call_operand.vmem [shape: f32[16,128], index: 6, kind: output, shape index: {1}]
  %s7 = inlined_call_operand.vmem [shape: f32[16,128], index: 7, kind: output, shape index: {2}]
  %8 = xla_tuple %s5, %s6, %s7
  %s9 = sld [smem:[#allocation0]]
  $region69: #{encoder_forward.4} parent=0
    _
  %s11 = ssub.s32 1, %s9
  %s12 = scalar_select 0, %s11, %s9
  %13 = sst [smem:[#allocation2]] %s4
  loop: start=0, step=1, limit=4
  $region2: #{encoder_forward.4} parent=0 // loop_pre_header
    _
  $region3: #{encoder_forward.4} parent=0 // loop_header
    %s15 = sphi 0, %s19
    %p16 = scmp.ge.s32.totalorder %s15, 4
    %s25 = sphi 0, %s27
    %s28 = sphi 0, %s25
    %s29 = sphi 0, %s28
    %s45 = sphi 0, %s29
    %s49 = sphi 0, %s49
    %s51 = sphi 0, %s49
    %s52 = sphi 0, %s51
    %s66 = sphi 0, %s52
    %s72 = sphi 0, %s74
    %s75 = sphi 0, %s72
    %s76 = sphi 0, %s75
    %s92 = sphi 0, %s76
    %s96 = sphi 0, %s96
    %s98 = sphi 0, %s96
    %s99 = sphi 0, %s98
    %s113 = sphi 0, %s99
    %s117 = sphi 0, %s117
    %s119 = sphi 0, %s117
    %s120 = sphi 0, %s119
    %s134 = sphi 0, %s120
    %s140 = sphi 0, %s142
    %s143 = sphi 0, %s140
    %s144 = sphi 0, %s143
    %s160 = sphi 0, %s144
    %s166 = sphi 0, %s168
    %s169 = sphi 0, %s166
    %s170 = sphi 0, %s169
    %s186 = sphi 0, %s170
    %s192 = sphi 0, %s194
    %s195 = sphi 0, %s192
    %s196 = sphi 0, %s195
    %s212 = sphi 0, %s196
  $region4: #{encoder_forward.4} parent=0 // loop_header_branch
    %18 = sbr.rel (%p16) target = $region8
  $region5: #{encoder_forward.4} parent=0 // loop_body
    %s20 = ssub.s32 %s15, 1
    %s21 = ssub.s32 %s15, 2
    %s22 = sadd.s32 %s15, 1
    %s23 = ssub.s32 %s15, %s22
    %p24 = scmp.eq.s32.totalorder %s23, 0
    %s26 = sadd.s32 %s25, 1
    %s27 = scalar_select %p24, %s25, %s26
    %p30 = pneg %p24
    %p31 = scmp.eq.s32.totalorder %s15, 1
    %p32 = por %p30, %p31
    %p33 = scmp.ne.s32.totalorder %s25, %s28
    %p34 = scmp.eq.s32.totalorder %s15, 0
    %p35 = por %p33, %p34
    %p36 = scmp.ne.s32.totalorder %s25, %s28
    %p37 = scmp.eq.s32.totalorder %s20, 1
    %p38 = por %p36, %p37
    %p39 = scmp.ne.s32.totalorder %s28, %s29
    %p40 = scmp.eq.s32.totalorder %s20, 0
    %p41 = por %p39, %p40
    %p42 = scmp.ne.s32.totalorder %s28, %s29
    %p43 = scmp.eq.s32.totalorder %s21, 1
    %p44 = por %p42, %p43
    %p46 = scmp.ne.s32.totalorder %s29, %s45
    %p47 = scmp.eq.s32.totalorder %s21, 0
    %p48 = por %p46, %p47
    %s50 = sadd.s32 %s49, 1
    %p53 = scmp.eq.s32.totalorder %s15, 1
    %p54 = scmp.ne.s32.totalorder %s49, %s51
    %p55 = scmp.eq.s32.totalorder %s15, 0
    %p56 = por %p54, %p55
    %p57 = scmp.ne.s32.totalorder %s49, %s51
    %p58 = scmp.eq.s32.totalorder %s20, 1
    %p59 = por %p57, %p58
    %p60 = scmp.ne.s32.totalorder %s51, %s52
    %p61 = scmp.eq.s32.totalorder %s20, 0
    %p62 = por %p60, %p61
    %p63 = scmp.ne.s32.totalorder %s51, %s52
    %p64 = scmp.eq.s32.totalorder %s21, 1
    %p65 = por %p63, %p64
    %p67 = scmp.ne.s32.totalorder %s52, %s66
    %p68 = scmp.eq.s32.totalorder %s21, 0
    %p69 = por %p67, %p68
    %s70 = ssub.s32 %s15, %s22
    %p71 = scmp.eq.s32.totalorder %s70, 0
    %s73 = sadd.s32 %s72, 1
    %s74 = scalar_select %p71, %s72, %s73
    %p77 = pneg %p71
    %p78 = scmp.eq.s32.totalorder %s15, 1
    %p79 = por %p77, %p78
    %p80 = scmp.ne.s32.totalorder %s72, %s75
    %p81 = scmp.eq.s32.totalorder %s15, 0
    %p82 = por %p80, %p81
    %p83 = scmp.ne.s32.totalorder %s72, %s75
    %p84 = scmp.eq.s32.totalorder %s20, 1
    %p85 = por %p83, %p84
    %p86 = scmp.ne.s32.totalorder %s75, %s76
    %p87 = scmp.eq.s32.totalorder %s20, 0
    %p88 = por %p86, %p87
    %p89 = scmp.ne.s32.totalorder %s75, %s76
    %p90 = scmp.eq.s32.totalorder %s21, 1
    %p91 = por %p89, %p90
    %p93 = scmp.ne.s32.totalorder %s76, %s92
    %p94 = scmp.eq.s32.totalorder %s21, 0
    %p95 = por %p93, %p94
    %s97 = sadd.s32 %s96, 1
    %p100 = scmp.eq.s32.totalorder %s15, 1
    %p101 = scmp.ne.s32.totalorder %s96, %s98
    %p102 = scmp.eq.s32.totalorder %s15, 0
    %p103 = por %p101, %p102
    %p104 = scmp.ne.s32.totalorder %s96, %s98
    %p105 = scmp.eq.s32.totalorder %s20, 1
    %p106 = por %p104, %p105
    %p107 = scmp.ne.s32.totalorder %s98, %s99
    %p108 = scmp.eq.s32.totalorder %s20, 0
    %p109 = por %p107, %p108
    %p110 = scmp.ne.s32.totalorder %s98, %s99
    %p111 = scmp.eq.s32.totalorder %s21, 1
    %p112 = por %p110, %p111
    %p114 = scmp.ne.s32.totalorder %s99, %s113
    %p115 = scmp.eq.s32.totalorder %s21, 0
    %p116 = por %p114, %p115
    %s118 = sadd.s32 %s117, 1
    %p121 = scmp.eq.s32.totalorder %s15, 1
    %p122 = scmp.ne.s32.totalorder %s117, %s119
    %p123 = scmp.eq.s32.totalorder %s15, 0
    %p124 = por %p122, %p123
    %p125 = scmp.ne.s32.totalorder %s117, %s119
    %p126 = scmp.eq.s32.totalorder %s20, 1
    %p127 = por %p125, %p126
    %p128 = scmp.ne.s32.totalorder %s119, %s120
    %p129 = scmp.eq.s32.totalorder %s20, 0
    %p130 = por %p128, %p129
    %p131 = scmp.ne.s32.totalorder %s119, %s120
    %p132 = scmp.eq.s32.totalorder %s21, 1
    %p133 = por %p131, %p132
    %p135 = scmp.ne.s32.totalorder %s120, %s134
    %p136 = scmp.eq.s32.totalorder %s21, 0
    %p137 = por %p135, %p136
    %s138 = ssub.s32 %s15, %s22
    %p139 = scmp.eq.s32.totalorder %s138, 0
    %s141 = sadd.s32 %s140, 1
    %s142 = scalar_select %p139, %s140, %s141
    %p145 = pneg %p139
    %p146 = scmp.eq.s32.totalorder %s15, 1
    %p147 = por %p145, %p146
    %p148 = scmp.ne.s32.totalorder %s140, %s143
    %p149 = scmp.eq.s32.totalorder %s15, 0
    %p150 = por %p148, %p149
    %p151 = scmp.ne.s32.totalorder %s140, %s143
    %p152 = scmp.eq.s32.totalorder %s20, 1
    %p153 = por %p151, %p152
    %p154 = scmp.ne.s32.totalorder %s143, %s144
    %p155 = scmp.eq.s32.totalorder %s20, 0
    %p156 = por %p154, %p155
    %p157 = scmp.ne.s32.totalorder %s143, %s144
    %p158 = scmp.eq.s32.totalorder %s21, 1
    %p159 = por %p157, %p158
    %p161 = scmp.ne.s32.totalorder %s144, %s160
    %p162 = scmp.eq.s32.totalorder %s21, 0
    %p163 = por %p161, %p162
    %s164 = ssub.s32 %s15, %s22
    %p165 = scmp.eq.s32.totalorder %s164, 0
    %s167 = sadd.s32 %s166, 1
    %s168 = scalar_select %p165, %s166, %s167
    %p171 = pneg %p165
    %p172 = scmp.eq.s32.totalorder %s15, 1
    %p173 = por %p171, %p172
    %p174 = scmp.ne.s32.totalorder %s166, %s169
    %p175 = scmp.eq.s32.totalorder %s15, 0
    %p176 = por %p174, %p175
    %p177 = scmp.ne.s32.totalorder %s166, %s169
    %p178 = scmp.eq.s32.totalorder %s20, 1
    %p179 = por %p177, %p178
    %p180 = scmp.ne.s32.totalorder %s169, %s170
    %p181 = scmp.eq.s32.totalorder %s20, 0
    %p182 = por %p180, %p181
    %p183 = scmp.ne.s32.totalorder %s169, %s170
    %p184 = scmp.eq.s32.totalorder %s21, 1
    %p185 = por %p183, %p184
    %p187 = scmp.ne.s32.totalorder %s170, %s186
    %p188 = scmp.eq.s32.totalorder %s21, 0
    %p189 = por %p187, %p188
    %s190 = ssub.s32 %s15, %s22
    %p191 = scmp.eq.s32.totalorder %s190, 0
    %s193 = sadd.s32 %s192, 1
    %s194 = scalar_select %p191, %s192, %s193
    %p197 = pneg %p191
    %p198 = scmp.eq.s32.totalorder %s15, 1
    %p199 = por %p197, %p198
    %p200 = scmp.ne.s32.totalorder %s192, %s195
    %p201 = scmp.eq.s32.totalorder %s15, 0
    %p202 = por %p200, %p201
    %p203 = scmp.ne.s32.totalorder %s192, %s195
    %p204 = scmp.eq.s32.totalorder %s20, 1
    %p205 = por %p203, %p204
    %p206 = scmp.ne.s32.totalorder %s195, %s196
    %p207 = scmp.eq.s32.totalorder %s20, 0
    %p208 = por %p206, %p207
    %p209 = scmp.ne.s32.totalorder %s195, %s196
    %p210 = scmp.eq.s32.totalorder %s21, 1
    %p211 = por %p209, %p210
    %p213 = scmp.ne.s32.totalorder %s196, %s212
    %p214 = scmp.eq.s32.totalorder %s21, 0
    %p215 = por %p213, %p214
    %p216 = scmp.le.s32.totalorder 1, %s15
    %p217 = scmp.lt.s32.totalorder %s15, 3
    %p218 = pnand %p216, %p217
    %p219 = pneg %p218
    // Predicated region
    $region9: #{encoder_forward.4} parent=5 // pred_check
      _
    $region10: #{encoder_forward.4} parent=5 // pred_check_branch
      %221 = sbr.rel (%p218) target = $region12
    $region11: #{encoder_forward.4} parent=5 // pred_region
      %s222 = ssub.s32 %s15, 1
      // Predicated region
      $region13: #{encoder_forward.4} parent=11 // pred_check
        %p223 = pneg %p62
      $region14: #{encoder_forward.4} parent=11 // pred_check_branch
        %225 = sbr.rel (%p223) target = $region16
      $region15: #{encoder_forward.4} parent=11 // pred_region
        _
      $region16: #{encoder_forward.4} parent=11 // pred_fallthru
        _
      // Predicated region
      $region17: #{encoder_forward.4} parent=11 // pred_check
        %p226 = pneg %p109
      $region18: #{encoder_forward.4} parent=11 // pred_check_branch
        %228 = sbr.rel (%p226) target = $region20
      $region19: #{encoder_forward.4} parent=11 // pred_region
        _
      $region20: #{encoder_forward.4} parent=11 // pred_fallthru
        _
      // Predicated region
      $region21: #{encoder_forward.4} parent=11 // pred_check
        %p229 = pneg %p130
      $region22: #{encoder_forward.4} parent=11 // pred_check_branch
        %231 = sbr.rel (%p229) target = $region24
      $region23: #{encoder_forward.4} parent=11 // pred_region
        _
      $region24: #{encoder_forward.4} parent=11 // pred_fallthru
        _
    $region12: #{encoder_forward.4} parent=5 // pred_fallthru
      _
    %p232 = scmp.lt.s32.totalorder %s15, 2
    // Predicated region
    $region25: #{encoder_forward.4} parent=5 // pred_check
      %p233 = pneg %p232
    $region26: #{encoder_forward.4} parent=5 // pred_check_branch
      %235 = sbr.rel (%p233) target = $region28
    $region27: #{encoder_forward.4} parent=5 // pred_region
      // Predicated region
      $region29: #{encoder_forward.4} parent=27 // pred_check
        %p236 = pneg %p35
      $region30: #{encoder_forward.4} parent=27 // pred_check_branch
        %238 = sbr.rel (%p236) target = $region32
      $region31: #{encoder_forward.4} parent=27 // pred_region
        %s239 = smul.u32 16, %s15
        %p240 = scmp.lt.s32.totalorder %s239, 31
        %s241 = scalar_select %p240, %s239, 31
        %s242 = smul.addr %s241, 2
        %s243 = smul.addr %s242, 4
        %s244 = scalar_lea.vmem %s0, %s243
        %s245 = smul.u32 16, %s15
      $region32: #{encoder_forward.4} parent=27 // pred_fallthru
        _
      // Predicated region
      $region33: #{encoder_forward.4} parent=27 // pred_check
        %p246 = pneg %p82
      $region34: #{encoder_forward.4} parent=27 // pred_check_branch
        %248 = sbr.rel (%p246) target = $region36
      $region35: #{encoder_forward.4} parent=27 // pred_region
        %s249 = smul.u32 16, %s15
        %p250 = scmp.lt.s32.totalorder %s249, 31
        %s251 = scalar_select %p250, %s249, 31
        %s252 = smul.addr %s251, 8
        %s253 = scalar_lea.vmem %s2, %s252
        %s254 = smul.u32 16, %s15
      $region36: #{encoder_forward.4} parent=27 // pred_fallthru
        _
    $region28: #{encoder_forward.4} parent=5 // pred_fallthru
      _
    %p255 = scmp.le.s32.totalorder 1, %s15
    %p256 = scmp.lt.s32.totalorder %s15, 3
    %p257 = pnand %p255, %p256
    %p258 = pneg %p257
    // Predicated region
    $region37: #{encoder_forward.4} parent=5 // pred_check
      _
    $region38: #{encoder_forward.4} parent=5 // pred_check_branch
      %260 = sbr.rel (%p257) target = $region40
    $region39: #{encoder_forward.4} parent=5 // pred_region
      %s261 = ssub.s32 %s15, 1
      %s262 = smul.u32 16, %s20
      %p263 = scmp.lt.s32.totalorder %s262, 31
      %s264 = scalar_select %p263, %s262, 31
      %s265 = smul.addr %s264, 2
      %s266 = smul.addr %s265, 4
      %s267 = scalar_lea.vmem %s0, %s266
      %p268 = pneg %p41
      %p269 = pneg %p38
      %p270 = pneg %p62
      %p271 = pneg %p59
      %s272 = smul.u32 16, %s20
      %p273 = scmp.lt.s32.totalorder %s272, 31
      %s274 = scalar_select %p273, %s272, 31
      %s275 = smul.addr %s274, 8
      %s276 = scalar_lea.vmem %s2, %s275
      %p277 = pneg %p88
      %p278 = pneg %p85
      %p279 = pneg %p109
      %p280 = pneg %p106
      %p281 = pneg %p130
      %p282 = pneg %p127
      %p283 = pneg %p156
      %p284 = pneg %p153
      %s285 = smul.u32 16, %s20
      %p286 = scmp.lt.s32.totalorder %s285, 31
      %s287 = scalar_select %p286, %s285, 31
      %s288 = smul.addr %s287, 8
      %s289 = scalar_lea.vmem %s5, %s288
      %p290 = pneg %p182
      %p291 = pneg %p179
      %p292 = scmp.lt.s32.totalorder %s20, 1
      %s293 = scalar_select %p292, %s20, 1
      %s294 = smul.addr %s293, 8
      %s295 = scalar_lea.vmem %s6, %s294
      %p296 = pneg %p208
      %p297 = pneg %p205
      %p298 = scmp.lt.s32.totalorder %s20, 1
      %s299 = scalar_select %p298, %s20, 1
      %s300 = smul.addr %s299, 8
      %s301 = scalar_lea.vmem %s7, %s300
      %s302 = smul.u32 16, %s20
      %p303 = scmp.lt.s32.totalorder %s302, 31
      %s304 = scalar_select %p303, %s302, 31
      %s305 = smul.addr %s304, 2
      %s306 = smul.addr %s305, 4
      %s307 = scalar_lea.vmem %s0, %s306
      %s308 = smul.u32 16, %s20
      %s309 = smul.u32 16, %s20
      %p310 = scmp.lt.s32.totalorder %s309, 31
      %s311 = scalar_select %p310, %s309, 31
      %s312 = smul.addr %s311, 8
      %s313 = scalar_lea.vmem %s2, %s312
      %s314 = smul.u32 16, %s20
      %s315 = smul.u32 16, %s20
      %p316 = scmp.lt.s32.totalorder %s315, 31
      %s317 = scalar_select %p316, %s315, 31
      %s318 = smul.addr %s317, 8
      %s319 = scalar_lea.vmem %s5, %s318
      %s320 = smul.u32 16, %s20
      %p321 = scmp.lt.s32.totalorder %s20, 1
      %s322 = scalar_select %p321, %s20, 1
      %s323 = smul.addr %s322, 8
      %s324 = scalar_lea.vmem %s6, %s323
      %p325 = scmp.lt.s32.totalorder %s20, 1
      %s326 = scalar_select %p325, %s20, 1
      %s327 = smul.addr %s326, 8
      %s328 = scalar_lea.vmem %s7, %s327
      %v330 = vld [vmem:[%s307] sm:$0xff]
      %v331 = vld [vmem:[%s307 + $0x8] sm:$0xff]
      %v332 = vld [vmem:[%s307 + $0x10] sm:$0xff]
      %v333 = vld [vmem:[%s307 + $0x18] sm:$0xff]
      %v334 = vld [vmem:[%s307 + $0x20] sm:$0xff]
      %v335 = vld [vmem:[%s307 + $0x28] sm:$0xff]
      %v336 = vld [vmem:[%s307 + $0x30] sm:$0xff]
      %v337 = vld [vmem:[%s307 + $0x38] sm:$0xff]
      %v338 = vld [vmem:[%s307 + $0x40] sm:$0xff]
      %v339 = vld [vmem:[%s307 + $0x48] sm:$0xff]
      %v340 = vld [vmem:[%s307 + $0x50] sm:$0xff]
      %v341 = vld [vmem:[%s307 + $0x58] sm:$0xff]
      %v342 = vld [vmem:[%s307 + $0x60] sm:$0xff]
      %v343 = vld [vmem:[%s307 + $0x68] sm:$0xff]
      %v344 = vld [vmem:[%s307 + $0x70] sm:$0xff]
      %v345 = vld [vmem:[%s307 + $0x78] sm:$0xff]
      %v346 = vld [vmem:[%s1] sm:$0xf]
      %v347 = vld [vmem:[%s1 + $0x4] sm:$0xf]
      %v348 = vld [vmem:[%s1 + $0x8] sm:$0xf]
      %v349 = vld [vmem:[%s1 + $0xc] sm:$0xf]
      %v350 = vld [vmem:[%s1 + $0x10] sm:$0xf]
      %v351 = vld [vmem:[%s1 + $0x14] sm:$0xf]
      %v352 = vld [vmem:[%s1 + $0x18] sm:$0xf]
      %v353 = vld [vmem:[%s1 + $0x1c] sm:$0xf]
      %v354 = vld [vmem:[%s1 + $0x20] sm:$0xf]
      %v355 = vld [vmem:[%s1 + $0x24] sm:$0xf]
      %v356 = vld [vmem:[%s1 + $0x28] sm:$0xf]
      %v357 = vld [vmem:[%s1 + $0x2c] sm:$0xf]
      %v358 = vld [vmem:[%s1 + $0x30] sm:$0xf]
      %v359 = vld [vmem:[%s1 + $0x34] sm:$0xf]
      %v360 = vld [vmem:[%s1 + $0x38] sm:$0xf]
      %v361 = vld [vmem:[%s1 + $0x3c] sm:$0xf]
      %v362 = vld [vmem:[%s1 + $0x40] sm:$0xf]
      %v363 = vld [vmem:[%s1 + $0x44] sm:$0xf]
      %v364 = vld [vmem:[%s1 + $0x48] sm:$0xf]
      %v365 = vld [vmem:[%s1 + $0x4c] sm:$0xf]
      %v366 = vld [vmem:[%s1 + $0x50] sm:$0xf]
      %v367 = vld [vmem:[%s1 + $0x54] sm:$0xf]
      %v368 = vld [vmem:[%s1 + $0x58] sm:$0xf]
      %v369 = vld [vmem:[%s1 + $0x5c] sm:$0xf]
      %v370 = vld [vmem:[%s1 + $0x60] sm:$0xf]
      %v371 = vld [vmem:[%s1 + $0x64] sm:$0xf]
      %v372 = vld [vmem:[%s1 + $0x68] sm:$0xf]
      %v373 = vld [vmem:[%s1 + $0x6c] sm:$0xf]
      %v374 = vld [vmem:[%s1 + $0x70] sm:$0xf]
      %v375 = vld [vmem:[%s1 + $0x74] sm:$0xf]
      %v376 = vld [vmem:[%s1 + $0x78] sm:$0xf]
      %v377 = vld [vmem:[%s1 + $0x7c] sm:$0xf]
      %v394 = vunpack.c.l.b16 %v330
      %v395 = vunpack.c.h.b16 %v330
      %v396 = vunpack.c.l.b16 %v331
      %v397 = vunpack.c.h.b16 %v331
      %v398 = vunpack.c.l.b16 %v332
      %v399 = vunpack.c.h.b16 %v332
      %v400 = vunpack.c.l.b16 %v333
      %v401 = vunpack.c.h.b16 %v333
      %v402 = vunpack.c.l.b16 %v334
      %v403 = vunpack.c.h.b16 %v334
      %v404 = vunpack.c.l.b16 %v335
      %v405 = vunpack.c.h.b16 %v335
      %v406 = vunpack.c.l.b16 %v336
      %v407 = vunpack.c.h.b16 %v336
      %v408 = vunpack.c.l.b16 %v337
      %v409 = vunpack.c.h.b16 %v337
      %v410 = vunpack.c.l.b16 %v338
      %v411 = vunpack.c.h.b16 %v338
      %v412 = vunpack.c.l.b16 %v339
      %v413 = vunpack.c.h.b16 %v339
      %v414 = vunpack.c.l.b16 %v340
      %v415 = vunpack.c.h.b16 %v340
      %v416 = vunpack.c.l.b16 %v341
      %v417 = vunpack.c.h.b16 %v341
      %v418 = vunpack.c.l.b16 %v342
      %v419 = vunpack.c.h.b16 %v342
      %v420 = vunpack.c.l.b16 %v343
      %v421 = vunpack.c.h.b16 %v343
      %v422 = vunpack.c.l.b16 %v344
      %v423 = vunpack.c.h.b16 %v344
      %v424 = vunpack.c.l.b16 %v345
      %v425 = vunpack.c.h.b16 %v345
      %v426 = vpack.c.b16 %v396, %v394
      %v427 = vpack.c.b16 %v397, %v395
      %v428 = vpack.c.b16 %v400, %v398
      %v429 = vpack.c.b16 %v401, %v399
      %v430 = vpack.c.b16 %v404, %v402
      %v431 = vpack.c.b16 %v405, %v403
      %v432 = vpack.c.b16 %v408, %v406
      %v433 = vpack.c.b16 %v409, %v407
      %v434 = vpack.c.b16 %v412, %v410
      %v435 = vpack.c.b16 %v413, %v411
      %v436 = vpack.c.b16 %v416, %v414
      %v437 = vpack.c.b16 %v417, %v415
      %v438 = vpack.c.b16 %v420, %v418
      %v439 = vpack.c.b16 %v421, %v419
      %v440 = vpack.c.b16 %v424, %v422
      %v441 = vpack.c.b16 %v425, %v423
      %v490 = vunpack.c.l.b16 %v346
      %v491 = vunpack.c.l.b16 %v347
      %v492 = vunpack.c.l.b16 %v348
      %v493 = vunpack.c.l.b16 %v349
      %v494 = vunpack.c.l.b16 %v350
      %v495 = vunpack.c.l.b16 %v351
      %v496 = vunpack.c.l.b16 %v352
      %v497 = vunpack.c.l.b16 %v353
      %v498 = vunpack.c.l.b16 %v354
      %v499 = vunpack.c.l.b16 %v355
      %v500 = vunpack.c.l.b16 %v356
      %v501 = vunpack.c.l.b16 %v357
      %v502 = vunpack.c.l.b16 %v358
      %v503 = vunpack.c.l.b16 %v359
      %v504 = vunpack.c.l.b16 %v360
      %v505 = vunpack.c.l.b16 %v361
      %v506 = vunpack.c.l.b16 %v362
      %v507 = vunpack.c.l.b16 %v363
      %v508 = vunpack.c.l.b16 %v364
      %v509 = vunpack.c.l.b16 %v365
      %v510 = vunpack.c.l.b16 %v366
      %v511 = vunpack.c.l.b16 %v367
      %v512 = vunpack.c.l.b16 %v368
      %v513 = vunpack.c.l.b16 %v369
      %v514 = vunpack.c.l.b16 %v370
      %v515 = vunpack.c.l.b16 %v371
      %v516 = vunpack.c.l.b16 %v372
      %v517 = vunpack.c.l.b16 %v373
      %v518 = vunpack.c.l.b16 %v374
      %v519 = vunpack.c.l.b16 %v375
      %v520 = vunpack.c.l.b16 %v376
      %v521 = vunpack.c.l.b16 %v377
      %v522 = vpack.c.b16 %v491, %v490
      %v523 = vpack.c.b16 %v493, %v492
      %v524 = vpack.c.b16 %v495, %v494
      %v525 = vpack.c.b16 %v497, %v496
      %v526 = vpack.c.b16 %v499, %v498
      %v527 = vpack.c.b16 %v501, %v500
      %v528 = vpack.c.b16 %v503, %v502
      %v529 = vpack.c.b16 %v505, %v504
      %v530 = vpack.c.b16 %v507, %v506
      %v531 = vpack.c.b16 %v509, %v508
      %v532 = vpack.c.b16 %v511, %v510
      %v533 = vpack.c.b16 %v513, %v512
      %v534 = vpack.c.b16 %v515, %v514
      %v535 = vpack.c.b16 %v517, %v516
      %v536 = vpack.c.b16 %v519, %v518
      %v537 = vpack.c.b16 %v521, %v520
      %554 = vmatprep.subr.bf16.mxu0 0
      %555 = vmatpush1.bf16.msra.mxu0 %v522
      %556 = vmatprep.subr.bf16.mxu0 0
      %557 = vmatpush1.bf16.msra.mxu0 %v523
      %558 = vmatprep.subr.bf16.mxu0 0
      %559 = vmatpush1.bf16.msra.mxu0 %v524
      %560 = vmatprep.subr.bf16.mxu0 0
      %561 = vmatpush1.bf16.msra.mxu0 %v525
      %562 = vmatprep.subr.bf16.mxu0 0
      %563 = vmatpush1.bf16.msra.mxu0 %v526
      %564 = vmatprep.subr.bf16.mxu0 0
      %565 = vmatpush1.bf16.msra.mxu0 %v527
      %566 = vmatprep.subr.bf16.mxu0 0
      %567 = vmatpush1.bf16.msra.mxu0 %v528
      %568 = vmatprep.subr.bf16.mxu0 0
      %569 = vmatpush1.bf16.msra.mxu0 %v529
      %570 = vmatprep.subr.bf16.mxu0 0
      %571 = vmatpush1.bf16.msra.mxu0 %v530
      %572 = vmatprep.subr.bf16.mxu0 0
      %573 = vmatpush1.bf16.msra.mxu0 %v531
      %574 = vmatprep.subr.bf16.mxu0 0
      %575 = vmatpush1.bf16.msra.mxu0 %v532
      %576 = vmatprep.subr.bf16.mxu0 0
      %577 = vmatpush1.bf16.msra.mxu0 %v533
      %578 = vmatprep.subr.bf16.mxu0 0
      %579 = vmatpush1.bf16.msra.mxu0 %v534
      %580 = vmatprep.subr.bf16.mxu0 0
      %581 = vmatpush1.bf16.msra.mxu0 %v535
      %582 = vmatprep.subr.bf16.mxu0 0
      %583 = vmatpush1.bf16.msra.mxu0 %v536
      %584 = vmatprep.subr.bf16.mxu0 0
      %585 = vmatpush1.bf16.msra.mxu0 %v537
      %586 = vmatprep.mubr.bf16.mxu0 %v427
      %587 = vmatmul.mubr.bf16.gmra.mrb[0].mxu0 %v426
      %v588 = vpop.f32.mrb[0].mxu0
      %v589 = vadd.f32 0.0, %v588
      %v590 = vpop.f32.mrb[0].mxu0
      %v591 = vpop.f32.mrb[0].mxu0
      %v592 = vadd.f32 0.0, %v591
      %v593 = vpop.f32.mrb[0].mxu0
      %594 = vmatprep.mubr.bf16.mxu0 %v429
      %595 = vmatmul.mubr.bf16.gmra.mrb[0].mxu0 %v428
      %v596 = vpop.f32.mrb[0].mxu0
      %v597 = vadd.f32 0.0, %v596
      %v598 = vpop.f32.mrb[0].mxu0
      %v599 = vpop.f32.mrb[0].mxu0
      %v600 = vadd.f32 0.0, %v599
      %v601 = vpop.f32.mrb[0].mxu0
      %602 = vmatprep.mubr.bf16.mxu0 %v431
      %603 = vmatmul.mubr.bf16.gmra.mrb[0].mxu0 %v430
      %v604 = vpop.f32.mrb[0].mxu0
      %v605 = vadd.f32 0.0, %v604
      %v606 = vpop.f32.mrb[0].mxu0
      %v607 = vpop.f32.mrb[0].mxu0
      %v608 = vadd.f32 0.0, %v607
      %v609 = vpop.f32.mrb[0].mxu0
      %610 = vmatprep.mubr.bf16.mxu0 %v433
      %611 = vmatmul.mubr.bf16.gmra.mrb[0].mxu0 %v432
      %v612 = vpop.f32.mrb[0].mxu0
      %v613 = vadd.f32 0.0, %v612
      %v614 = vpop.f32.mrb[0].mxu0
      %v615 = vpop.f32.mrb[0].mxu0
      %v616 = vadd.f32 0.0, %v615
      %v617 = vpop.f32.mrb[0].mxu0
      %618 = vmatprep.mubr.bf16.mxu0 %v435
      %619 = vmatmul.mubr.bf16.gmra.mrb[0].mxu0 %v434
      %v620 = vpop.f32.mrb[0].mxu0
      %v621 = vadd.f32 0.0, %v620
      %v622 = vpop.f32.mrb[0].mxu0
      %v623 = vpop.f32.mrb[0].mxu0
      %v624 = vadd.f32 0.0, %v623
      %v625 = vpop.f32.mrb[0].mxu0
      %626 = vmatprep.mubr.bf16.mxu0 %v437
      %627 = vmatmul.mubr.bf16.gmra.mrb[0].mxu0 %v436
      %v628 = vpop.f32.mrb[0].mxu0
      %v629 = vadd.f32 0.0, %v628
      %v630 = vpop.f32.mrb[0].mxu0
      %v631 = vpop.f32.mrb[0].mxu0
      %v632 = vadd.f32 0.0, %v631
      %v633 = vpop.f32.mrb[0].mxu0
      %634 = vmatprep.mubr.bf16.mxu0 %v439
      %635 = vmatmul.mubr.bf16.gmra.mrb[0].mxu0 %v438
      %v636 = vpop.f32.mrb[0].mxu0
      %v637 = vadd.f32 0.0, %v636
      %v638 = vpop.f32.mrb[0].mxu0
      %v639 = vpop.f32.mrb[0].mxu0
      %v640 = vadd.f32 0.0, %v639
      %v641 = vpop.f32.mrb[0].mxu0
      %642 = vmatprep.mubr.bf16.mxu0 %v441
      %643 = vmatmul.mubr.bf16.gmra.mrb[0].mxu0 %v440
      %v644 = vpop.f32.mrb[0].mxu0
      %v645 = vadd.f32 0.0, %v644
      %v646 = vpop.f32.mrb[0].mxu0
      %v647 = vpop.f32.mrb[0].mxu0
      %v648 = vadd.f32 0.0, %v647
      %v649 = vpop.f32.mrb[0].mxu0
      %650 = vdwg.mxu0
      %v651 = vld [vmem:[%s313] sm:$0xff]
      %v652 = vld [vmem:[%s313 + $0x8] sm:$0xff]
      %v653 = vld [vmem:[%s313 + $0x10] sm:$0xff]
      %v654 = vld [vmem:[%s313 + $0x18] sm:$0xff]
      %v655 = vld [vmem:[%s313 + $0x20] sm:$0xff]
      %v656 = vld [vmem:[%s313 + $0x28] sm:$0xff]
      %v657 = vld [vmem:[%s313 + $0x30] sm:$0xff]
      %v658 = vld [vmem:[%s313 + $0x38] sm:$0xff]
      %v659 = vld [vmem:[%s313 + $0x40] sm:$0xff]
      %v660 = vld [vmem:[%s313 + $0x48] sm:$0xff]
      %v661 = vld [vmem:[%s313 + $0x50] sm:$0xff]
      %v662 = vld [vmem:[%s313 + $0x58] sm:$0xff]
      %v663 = vld [vmem:[%s313 + $0x60] sm:$0xff]
      %v664 = vld [vmem:[%s313 + $0x68] sm:$0xff]
      %v665 = vld [vmem:[%s313 + $0x70] sm:$0xff]
      %v666 = vld [vmem:[%s313 + $0x78] sm:$0xff]
      %668 = vset.pattern.permute.xlu0 0
      %669 = vperm.xlu0 %668, %v651
      %v670 = vpop.permute.xlu0 %669
      %673 = vset.pattern.permute.xlu0 0
      %674 = vperm.xlu0 %673, %v652
      %v675 = vpop.permute.xlu0 %674
      %678 = vset.pattern.permute.xlu0 0
      %679 = vperm.xlu0 %678, %v653
      %v680 = vpop.permute.xlu0 %679
      %683 = vset.pattern.permute.xlu0 0
      %684 = vperm.xlu0 %683, %v654
      %v685 = vpop.permute.xlu0 %684
      %688 = vset.pattern.permute.xlu0 0
      %689 = vperm.xlu0 %688, %v655
      %v690 = vpop.permute.xlu0 %689
      %693 = vset.pattern.permute.xlu0 0
      %694 = vperm.xlu0 %693, %v656
      %v695 = vpop.permute.xlu0 %694
      %698 = vset.pattern.permute.xlu0 0
      %699 = vperm.xlu0 %698, %v657
      %v700 = vpop.permute.xlu0 %699
      %703 = vset.pattern.permute.xlu0 0
      %704 = vperm.xlu0 %703, %v658
      %v705 = vpop.permute.xlu0 %704
      %708 = vset.pattern.permute.xlu0 0
      %709 = vperm.xlu0 %708, %v659
      %v710 = vpop.permute.xlu0 %709
      %713 = vset.pattern.permute.xlu0 0
      %714 = vperm.xlu0 %713, %v660
      %v715 = vpop.permute.xlu0 %714
      %718 = vset.pattern.permute.xlu0 0
      %719 = vperm.xlu0 %718, %v661
      %v720 = vpop.permute.xlu0 %719
      %723 = vset.pattern.permute.xlu0 0
      %724 = vperm.xlu0 %723, %v662
      %v725 = vpop.permute.xlu0 %724
      %728 = vset.pattern.permute.xlu0 0
      %729 = vperm.xlu0 %728, %v663
      %v730 = vpop.permute.xlu0 %729
      %733 = vset.pattern.permute.xlu0 0
      %734 = vperm.xlu0 %733, %v664
      %v735 = vpop.permute.xlu0 %734
      %738 = vset.pattern.permute.xlu0 0
      %739 = vperm.xlu0 %738, %v665
      %v740 = vpop.permute.xlu0 %739
      %743 = vset.pattern.permute.xlu0 0
      %744 = vperm.xlu0 %743, %v666
      %v745 = vpop.permute.xlu0 %744
      %v747 = vmul.f32 %v589, %v670
      %v748 = vmul.f32 %v592, %v675
      %v749 = vmul.f32 %v597, %v680
      %v750 = vmul.f32 %v600, %v685
      %v751 = vmul.f32 %v605, %v690
      %v752 = vmul.f32 %v608, %v695
      %v753 = vmul.f32 %v613, %v700
      %v754 = vmul.f32 %v616, %v705
      %v755 = vmul.f32 %v621, %v710
      %v756 = vmul.f32 %v624, %v715
      %v757 = vmul.f32 %v629, %v720
      %v758 = vmul.f32 %v632, %v725
      %v759 = vmul.f32 %v637, %v730
      %v760 = vmul.f32 %v640, %v735
      %v761 = vmul.f32 %v645, %v740
      %v762 = vmul.f32 %v648, %v745
      %v763 = vld [vmem:[%s3] sm:$0x1]
      %v765 = vlaneseq
      %v766 = vshrl.u32 %v765, 7
      %v767 = vsub.s32 0, %v766
      %v768 = vrot.slane %v763, %v767
      %v770 = vadd.f32 %v747, %v768
      %v771 = vadd.f32 %v748, %v768
      %v772 = vadd.f32 %v749, %v768
      %v773 = vadd.f32 %v750, %v768
      %v774 = vadd.f32 %v751, %v768
      %v775 = vadd.f32 %v752, %v768
      %v776 = vadd.f32 %v753, %v768
      %v777 = vadd.f32 %v754, %v768
      %v778 = vadd.f32 %v755, %v768
      %v779 = vadd.f32 %v756, %v768
      %v780 = vadd.f32 %v757, %v768
      %v781 = vadd.f32 %v758, %v768
      %v782 = vadd.f32 %v759, %v768
      %v783 = vadd.f32 %v760, %v768
      %v784 = vadd.f32 %v761, %v768
      %v785 = vadd.f32 %v762, %v768
      %s786 = sld [smem:[#allocation2]]
      %vm787 = vcmp.gt.f32.partialorder %v770, 0.0
      %vm788 = vcmp.gt.f32.partialorder %v771, 0.0
      %vm789 = vcmp.gt.f32.partialorder %v772, 0.0
      %vm790 = vcmp.gt.f32.partialorder %v773, 0.0
      %vm791 = vcmp.gt.f32.partialorder %v774, 0.0
      %vm792 = vcmp.gt.f32.partialorder %v775, 0.0
      %vm793 = vcmp.gt.f32.partialorder %v776, 0.0
      %vm794 = vcmp.gt.f32.partialorder %v777, 0.0
      %vm795 = vcmp.gt.f32.partialorder %v778, 0.0
      %vm796 = vcmp.gt.f32.partialorder %v779, 0.0
      %vm797 = vcmp.gt.f32.partialorder %v780, 0.0
      %vm798 = vcmp.gt.f32.partialorder %v781, 0.0
      %vm799 = vcmp.gt.f32.partialorder %v782, 0.0
      %vm800 = vcmp.gt.f32.partialorder %v783, 0.0
      %vm801 = vcmp.gt.f32.partialorder %v784, 0.0
      %vm802 = vcmp.gt.f32.partialorder %v785, 0.0
      %v803 = vstv %s786
      %v804 = vmul.f32 %v803, %v770
      %v805 = vmul.f32 %v803, %v771
      %v806 = vmul.f32 %v803, %v772
      %v807 = vmul.f32 %v803, %v773
      %v808 = vmul.f32 %v803, %v774
      %v809 = vmul.f32 %v803, %v775
      %v810 = vmul.f32 %v803, %v776
      %v811 = vmul.f32 %v803, %v777
      %v812 = vmul.f32 %v803, %v778
      %v813 = vmul.f32 %v803, %v779
      %v814 = vmul.f32 %v803, %v780
      %v815 = vmul.f32 %v803, %v781
      %v816 = vmul.f32 %v803, %v782
      %v817 = vmul.f32 %v803, %v783
      %v818 = vmul.f32 %v803, %v784
      %v819 = vmul.f32 %v803, %v785
      %v820 = vsel %vm787, %v770, %v804
      %v821 = vsel %vm788, %v771, %v805
      %v822 = vsel %vm789, %v772, %v806
      %v823 = vsel %vm790, %v773, %v807
      %v824 = vsel %vm791, %v774, %v808
      %v825 = vsel %vm792, %v775, %v809
      %v826 = vsel %vm793, %v776, %v810
      %v827 = vsel %vm794, %v777, %v811
      %v828 = vsel %vm795, %v778, %v812
      %v829 = vsel %vm796, %v779, %v813
      %v830 = vsel %vm797, %v780, %v814
      %v831 = vsel %vm798, %v781, %v815
      %v832 = vsel %vm799, %v782, %v816
      %v833 = vsel %vm800, %v783, %v817
      %v834 = vsel %vm801, %v784, %v818
      %v835 = vsel %vm802, %v785, %v819
      %836 = vst [vmem:[%s319] sm:$0xff] %v820
      %837 = vst [vmem:[%s319 + $0x8] sm:$0xff] %v821
      %838 = vst [vmem:[%s319 + $0x10] sm:$0xff] %v822
      %839 = vst [vmem:[%s319 + $0x18] sm:$0xff] %v823
      %840 = vst [vmem:[%s319 + $0x20] sm:$0xff] %v824
      %841 = vst [vmem:[%s319 + $0x28] sm:$0xff] %v825
      %842 = vst [vmem:[%s319 + $0x30] sm:$0xff] %v826
      %843 = vst [vmem:[%s319 + $0x38] sm:$0xff] %v827
      %844 = vst [vmem:[%s319 + $0x40] sm:$0xff] %v828
      %845 = vst [vmem:[%s319 + $0x48] sm:$0xff] %v829
      %846 = vst [vmem:[%s319 + $0x50] sm:$0xff] %v830
      %847 = vst [vmem:[%s319 + $0x58] sm:$0xff] %v831
      %848 = vst [vmem:[%s319 + $0x60] sm:$0xff] %v832
      %849 = vst [vmem:[%s319 + $0x68] sm:$0xff] %v833
      %850 = vst [vmem:[%s319 + $0x70] sm:$0xff] %v834
      %851 = vst [vmem:[%s319 + $0x78] sm:$0xff] %v835
      %s852 = smul.u32 %s20, 128
      %v853 = vlaneseq
      %v854 = vshrl.u32 %v853, 7
      %v855 = vadd.s32 %v854, 8
      %v856 = vadd.s32 %v854, 16
      %v857 = vadd.s32 %v854, 24
      %v858 = vadd.s32 %v854, 32
      %v859 = vadd.s32 %v854, 40
      %v860 = vadd.s32 %v854, 48
      %v861 = vadd.s32 %v854, 56
      %v862 = vadd.s32 %v854, 64
      %v863 = vadd.s32 %v854, 72
      %v864 = vadd.s32 %v854, 80
      %v865 = vadd.s32 %v854, 88
      %v866 = vadd.s32 %v854, 96
      %v867 = vadd.s32 %v854, 104
      %v868 = vadd.s32 %v854, 112
      %v869 = vadd.s32 %v854, 120
      %v870 = vstv %s852
      %v871 = vadd.s32 %v870, %v854
      %v872 = vadd.s32 %v870, %v855
      %v873 = vadd.s32 %v870, %v856
      %v874 = vadd.s32 %v870, %v857
      %v875 = vadd.s32 %v870, %v858
      %v876 = vadd.s32 %v870, %v859
      %v877 = vadd.s32 %v870, %v860
      %v878 = vadd.s32 %v870, %v861
      %v879 = vadd.s32 %v870, %v862
      %v880 = vadd.s32 %v870, %v863
      %v881 = vadd.s32 %v870, %v864
      %v882 = vadd.s32 %v870, %v865
      %v883 = vadd.s32 %v870, %v866
      %v884 = vadd.s32 %v870, %v867
      %v885 = vadd.s32 %v870, %v868
      %v886 = vadd.s32 %v870, %v869
      %vm887 = vcmp.lt.s32.totalorder %v871, 200
      %vm888 = vcmp.lt.s32.totalorder %v872, 200
      %vm889 = vcmp.lt.s32.totalorder %v873, 200
      %vm890 = vcmp.lt.s32.totalorder %v874, 200
      %vm891 = vcmp.lt.s32.totalorder %v875, 200
      %vm892 = vcmp.lt.s32.totalorder %v876, 200
      %vm893 = vcmp.lt.s32.totalorder %v877, 200
      %vm894 = vcmp.lt.s32.totalorder %v878, 200
      %vm895 = vcmp.lt.s32.totalorder %v879, 200
      %vm896 = vcmp.lt.s32.totalorder %v880, 200
      %vm897 = vcmp.lt.s32.totalorder %v881, 200
      %vm898 = vcmp.lt.s32.totalorder %v882, 200
      %vm899 = vcmp.lt.s32.totalorder %v883, 200
      %vm900 = vcmp.lt.s32.totalorder %v884, 200
      %vm901 = vcmp.lt.s32.totalorder %v885, 200
      %vm902 = vcmp.lt.s32.totalorder %v886, 200
      %v903 = vsel %vm887, %v820, 0.0
      %v904 = vsel %vm888, %v821, 0.0
      %v905 = vsel %vm889, %v822, 0.0
      %v906 = vsel %vm890, %v823, 0.0
      %v907 = vsel %vm891, %v824, 0.0
      %v908 = vsel %vm892, %v825, 0.0
      %v909 = vsel %vm893, %v826, 0.0
      %v910 = vsel %vm894, %v827, 0.0
      %v911 = vsel %vm895, %v828, 0.0
      %v912 = vsel %vm896, %v829, 0.0
      %v913 = vsel %vm897, %v830, 0.0
      %v914 = vsel %vm898, %v831, 0.0
      %v915 = vsel %vm899, %v832, 0.0
      %v916 = vsel %vm900, %v833, 0.0
      %v917 = vsel %vm901, %v834, 0.0
      %v918 = vsel %vm902, %v835, 0.0
      %v919 = vadd.f32 %v903, %v904
      %v920 = vadd.f32 %v919, %v905
      %v921 = vadd.f32 %v920, %v906
      %v922 = vadd.f32 %v921, %v907
      %v923 = vadd.f32 %v922, %v908
      %v924 = vadd.f32 %v923, %v909
      %v925 = vadd.f32 %v924, %v910
      %v926 = vadd.f32 %v925, %v911
      %v927 = vadd.f32 %v926, %v912
      %v928 = vadd.f32 %v927, %v913
      %v929 = vadd.f32 %v928, %v914
      %v930 = vadd.f32 %v929, %v915
      %v931 = vadd.f32 %v930, %v916
      %v932 = vadd.f32 %v931, %v917
      %v933 = vadd.f32 %v932, %v918
      %v934 = vrot.slane %v933, 4
      %v935 = vadd.f32 %v933, %v934
      %v936 = vrot.slane %v935, 2
      %v937 = vadd.f32 %v935, %v936
      %v938 = vrot.slane %v937, 1
      %v939 = vadd.f32 %v937, %v938
      %v940 = vmul.f32 %v903, %v903
      %v941 = vmul.f32 %v904, %v904
      %v942 = vmul.f32 %v905, %v905
      %v943 = vmul.f32 %v906, %v906
      %v944 = vmul.f32 %v907, %v907
      %v945 = vmul.f32 %v908, %v908
      %v946 = vmul.f32 %v909, %v909
      %v947 = vmul.f32 %v910, %v910
      %v948 = vmul.f32 %v911, %v911
      %v949 = vmul.f32 %v912, %v912
      %v950 = vmul.f32 %v913, %v913
      %v951 = vmul.f32 %v914, %v914
      %v952 = vmul.f32 %v915, %v915
      %v953 = vmul.f32 %v916, %v916
      %v954 = vmul.f32 %v917, %v917
      %v955 = vmul.f32 %v918, %v918
      %v956 = vadd.f32 %v940, %v941
      %v957 = vadd.f32 %v956, %v942
      %v958 = vadd.f32 %v957, %v943
      %v959 = vadd.f32 %v958, %v944
      %v960 = vadd.f32 %v959, %v945
      %v961 = vadd.f32 %v960, %v946
      %v962 = vadd.f32 %v961, %v947
      %v963 = vadd.f32 %v962, %v948
      %v964 = vadd.f32 %v963, %v949
      %v965 = vadd.f32 %v964, %v950
      %v966 = vadd.f32 %v965, %v951
      %v967 = vadd.f32 %v966, %v952
      %v968 = vadd.f32 %v967, %v953
      %v969 = vadd.f32 %v968, %v954
      %v970 = vadd.f32 %v969, %v955
      %v971 = vrot.slane %v970, 4
      %v972 = vadd.f32 %v970, %v971
      %v973 = vrot.slane %v972, 2
      %v974 = vadd.f32 %v972, %v973
      %v975 = vrot.slane %v974, 1
      %v976 = vadd.f32 %v974, %v975
      %977 = vst [vmem:[%s324] sm:$0xff] %v939
      %978 = vst [vmem:[%s328] sm:$0xff] %v976
      %s979 = smul.u32 16, %s20
      %p980 = scmp.lt.s32.totalorder %s979, 31
      %s981 = scalar_select %p980, %s979, 31
      %s982 = smul.addr %s981, 8
      %s983 = scalar_lea.vmem %s5, %s982
      %p984 = scmp.lt.s32.totalorder %s20, 1
      %s985 = scalar_select %p984, %s20, 1
      %s986 = smul.addr %s985, 8
      %s987 = scalar_lea.vmem %s6, %s986
      %p988 = scmp.lt.s32.totalorder %s20, 1
      %s989 = scalar_select %p988, %s20, 1
      %s990 = smul.addr %s989, 8
      %s991 = scalar_lea.vmem %s7, %s990
      // Predicated region
      $region41: #{encoder_forward.4} parent=39 // pred_check
        %p992 = pneg %p153
      $region42: #{encoder_forward.4} parent=39 // pred_check_branch
        %994 = sbr.rel (%p992) target = $region44
      $region43: #{encoder_forward.4} parent=39 // pred_region
        %s995 = smul.u32 16, %s20
      $region44: #{encoder_forward.4} parent=39 // pred_fallthru
        _
      // Predicated region
      $region45: #{encoder_forward.4} parent=39 // pred_check
        %p996 = pneg %p179
      $region46: #{encoder_forward.4} parent=39 // pred_check_branch
        %998 = sbr.rel (%p996) target = $region48
      $region47: #{encoder_forward.4} parent=39 // pred_region
        _
      $region48: #{encoder_forward.4} parent=39 // pred_fallthru
        _
      // Predicated region
      $region49: #{encoder_forward.4} parent=39 // pred_check
        %p999 = pneg %p205
      $region50: #{encoder_forward.4} parent=39 // pred_check_branch
        %1001 = sbr.rel (%p999) target = $region52
      $region51: #{encoder_forward.4} parent=39 // pred_region
        _
      $region52: #{encoder_forward.4} parent=39 // pred_fallthru
        _
    $region40: #{encoder_forward.4} parent=5 // pred_fallthru
      _
    %p1002 = scmp.le.s32.totalorder 2, %s15
    // Predicated region
    $region53: #{encoder_forward.4} parent=5 // pred_check
      %p1003 = pneg %p1002
    $region54: #{encoder_forward.4} parent=5 // pred_check_branch
      %1005 = sbr.rel (%p1003) target = $region56
    $region55: #{encoder_forward.4} parent=5 // pred_region
      %s1006 = ssub.s32 %s15, 2
      // Predicated region
      $region57: #{encoder_forward.4} parent=55 // pred_check
        %p1007 = pneg %p159
      $region58: #{encoder_forward.4} parent=55 // pred_check_branch
        %1009 = sbr.rel (%p1007) target = $region60
      $region59: #{encoder_forward.4} parent=55 // pred_region
        %s1010 = smul.u32 16, %s21
        %p1011 = scmp.lt.s32.totalorder %s1010, 31
        %s1012 = scalar_select %p1011, %s1010, 31
        %s1013 = smul.addr %s1012, 8
        %s1014 = scalar_lea.vmem %s5, %s1013
      $region60: #{encoder_forward.4} parent=55 // pred_fallthru
        _
      // Predicated region
      $region61: #{encoder_forward.4} parent=55 // pred_check
        %p1015 = pneg %p185
      $region62: #{encoder_forward.4} parent=55 // pred_check_branch
        %1017 = sbr.rel (%p1015) target = $region64
      $region63: #{encoder_forward.4} parent=55 // pred_region
        %p1018 = scmp.lt.s32.totalorder %s21, 1
        %s1019 = scalar_select %p1018, %s21, 1
        %s1020 = smul.addr %s1019, 8
        %s1021 = scalar_lea.vmem %s6, %s1020
      $region64: #{encoder_forward.4} parent=55 // pred_fallthru
        _
      // Predicated region
      $region65: #{encoder_forward.4} parent=55 // pred_check
        %p1022 = pneg %p211
      $region66: #{encoder_forward.4} parent=55 // pred_check_branch
        %1024 = sbr.rel (%p1022) target = $region68
      $region67: #{encoder_forward.4} parent=55 // pred_region
        %p1025 = scmp.lt.s32.totalorder %s21, 1
        %s1026 = scalar_select %p1025, %s21, 1
        %s1027 = smul.addr %s1026, 8
        %s1028 = scalar_lea.vmem %s7, %s1027
      $region68: #{encoder_forward.4} parent=55 // pred_fallthru
        _
    $region56: #{encoder_forward.4} parent=5 // pred_fallthru
      _
  $region6: #{encoder_forward.4} parent=0 // loop_footer
    %s19 = sadd.s32 1, %s15
  $region7: #{encoder_forward.4} parent=0 // loop_footer_branch
    %14 = sbr.rel target = $region3
  $region8: #{encoder_forward.4} parent=0 // loop_exit
    _

// kernel: encoder_forward.3
$region0: #{encoder_forward.3}
  #allocation0 [shape = 'u32[]', space=smem, size = 0x4, offset = 0x4, fixed_abs, tag = 'smem constant byte address 0x4 - core index']
  #allocation1 [shape = 'u32[144,128]{1,0:T(1,128)}', space=vmem, size = 0x12000, scoped, tag = 'internal scratch']
  #allocation2 [shape = 's32[1]{0:T(128)S(6)}', space=smem, size = 0x200, scoped, tag = 'scoped memory for encoder_forward.3']
  %s0 = inlined_call_operand.<no memory space> [shape: s32[1], index: 0, kind: input, shape index: {}]
  %s1 = inlined_call_operand.vmem [shape: f32[256,128], index: 1, kind: input, shape index: {}]
  %s2 = inlined_call_operand.vmem [shape: bf16[128,128], index: 2, kind: input, shape index: {}]
  %s3 = inlined_call_operand.vmem [shape: f32[256,1], index: 3, kind: input, shape index: {}]
  %s4 = inlined_call_operand.vmem [shape: bf16[256,128], index: 4, kind: output, shape index: {}]
  %s5 = sld [smem:[#allocation0]]
  $region26: #{encoder_forward.3} parent=0
    _
  %s7 = ssub.s32 1, %s5
  %s8 = scalar_select 0, %s7, %s5
  %9 = sst [smem:[#allocation2]] %s0
  // Predicated region
  $region2: #{encoder_forward.3} parent=0 // pred_check
    _
  $region3: #{encoder_forward.3} parent=0 // pred_check_branch
    %11 = sbr.rel (0) target = $region5
  $region4: #{encoder_forward.3} parent=0 // pred_region
    _
  $region5: #{encoder_forward.3} parent=0 // pred_fallthru
    _
  // Predicated region
  $region6: #{encoder_forward.3} parent=0 // pred_check
    _
  $region7: #{encoder_forward.3} parent=0 // pred_check_branch
    %13 = sbr.rel (0) target = $region9
  $region8: #{encoder_forward.3} parent=0 // pred_region
    _
  $region9: #{encoder_forward.3} parent=0 // pred_fallthru
    _
  // Predicated region
  $region10: #{encoder_forward.3} parent=0 // pred_check
    _
  $region11: #{encoder_forward.3} parent=0 // pred_check_branch
    %15 = sbr.rel (0) target = $region13
  $region12: #{encoder_forward.3} parent=0 // pred_region
    _
  $region13: #{encoder_forward.3} parent=0 // pred_fallthru
    _
  // Predicated region
  $region14: #{encoder_forward.3} parent=0 // pred_check
    _
  $region15: #{encoder_forward.3} parent=0 // pred_check_branch
    %17 = sbr.rel (0) target = $region17
  $region16: #{encoder_forward.3} parent=0 // pred_region
    _
  $region17: #{encoder_forward.3} parent=0 // pred_fallthru
    _
  %v19 = vld [vmem:[%s1] sm:$0xff]
  %v20 = vld [vmem:[%s1 + $0x8] sm:$0xff]
  %v21 = vld [vmem:[%s1 + $0x10] sm:$0xff]
  %v22 = vld [vmem:[%s1 + $0x18] sm:$0xff]
  %v23 = vld [vmem:[%s1 + $0x20] sm:$0xff]
  %v24 = vld [vmem:[%s1 + $0x28] sm:$0xff]
  %v25 = vld [vmem:[%s1 + $0x30] sm:$0xff]
  %v26 = vld [vmem:[%s1 + $0x38] sm:$0xff]
  %v27 = vld [vmem:[%s1 + $0x40] sm:$0xff]
  %v28 = vld [vmem:[%s1 + $0x48] sm:$0xff]
  %v29 = vld [vmem:[%s1 + $0x50] sm:$0xff]
  %v30 = vld [vmem:[%s1 + $0x58] sm:$0xff]
  %v31 = vld [vmem:[%s1 + $0x60] sm:$0xff]
  %v32 = vld [vmem:[%s1 + $0x68] sm:$0xff]
  %v33 = vld [vmem:[%s1 + $0x70] sm:$0xff]
  %v34 = vld [vmem:[%s1 + $0x78] sm:$0xff]
  %v35 = vld [vmem:[%s1 + $0x80] sm:$0xff]
  %v36 = vld [vmem:[%s1 + $0x88] sm:$0xff]
  %v37 = vld [vmem:[%s1 + $0x90] sm:$0xff]
  %v38 = vld [vmem:[%s1 + $0x98] sm:$0xff]
  %v39 = vld [vmem:[%s1 + $0xa0] sm:$0xff]
  %v40 = vld [vmem:[%s1 + $0xa8] sm:$0xff]
  %v41 = vld [vmem:[%s1 + $0xb0] sm:$0xff]
  %v42 = vld [vmem:[%s1 + $0xb8] sm:$0xff]
  %v43 = vld [vmem:[%s1 + $0xc0] sm:$0xff]
  %v44 = vld [vmem:[%s1 + $0xc8] sm:$0xff]
  %v45 = vld [vmem:[%s1 + $0xd0] sm:$0xff]
  %v46 = vld [vmem:[%s1 + $0xd8] sm:$0xff]
  %v47 = vld [vmem:[%s1 + $0xe0] sm:$0xff]
  %v48 = vld [vmem:[%s1 + $0xe8] sm:$0xff]
  %v49 = vld [vmem:[%s1 + $0xf0] sm:$0xff]
  %v50 = vld [vmem:[%s1 + $0xf8] sm:$0xff]
  %v51 = vpack.c.bf16 %v20, %v19
  %v52 = vpack.c.bf16 %v22, %v21
  %v53 = vpack.c.bf16 %v24, %v23
  %v54 = vpack.c.bf16 %v26, %v25
  %v55 = vpack.c.bf16 %v28, %v27
  %v56 = vpack.c.bf16 %v30, %v29
  %v57 = vpack.c.bf16 %v32, %v31
  %v58 = vpack.c.bf16 %v34, %v33
  %v59 = vpack.c.bf16 %v36, %v35
  %v60 = vpack.c.bf16 %v38, %v37
  %v61 = vpack.c.bf16 %v40, %v39
  %v62 = vpack.c.bf16 %v42, %v41
  %v63 = vpack.c.bf16 %v44, %v43
  %v64 = vpack.c.bf16 %v46, %v45
  %v65 = vpack.c.bf16 %v48, %v47
  %v66 = vpack.c.bf16 %v50, %v49
  %v67 = vld [vmem:[%s2] sm:$0xf]
  %v68 = vld [vmem:[%s2 + $0x4] sm:$0xf]
  %v69 = vld [vmem:[%s2 + $0x8] sm:$0xf]
  %v70 = vld [vmem:[%s2 + $0xc] sm:$0xf]
  %v71 = vld [vmem:[%s2 + $0x10] sm:$0xf]
  %v72 = vld [vmem:[%s2 + $0x14] sm:$0xf]
  %v73 = vld [vmem:[%s2 + $0x18] sm:$0xf]
  %v74 = vld [vmem:[%s2 + $0x1c] sm:$0xf]
  %v75 = vld [vmem:[%s2 + $0x20] sm:$0xf]
  %v76 = vld [vmem:[%s2 + $0x24] sm:$0xf]
  %v77 = vld [vmem:[%s2 + $0x28] sm:$0xf]
  %v78 = vld [vmem:[%s2 + $0x2c] sm:$0xf]
  %v79 = vld [vmem:[%s2 + $0x30] sm:$0xf]
  %v80 = vld [vmem:[%s2 + $0x34] sm:$0xf]
  %v81 = vld [vmem:[%s2 + $0x38] sm:$0xf]
  %v82 = vld [vmem:[%s2 + $0x3c] sm:$0xf]
  %v99 = vunpack.c.l.b16 %v67
  %v100 = vunpack.c.l.b16 %v68
  %v101 = vunpack.c.l.b16 %v69
  %v102 = vunpack.c.l.b16 %v70
  %v103 = vunpack.c.l.b16 %v71
  %v104 = vunpack.c.l.b16 %v72
  %v105 = vunpack.c.l.b16 %v73
  %v106 = vunpack.c.l.b16 %v74
  %v107 = vunpack.c.l.b16 %v75
  %v108 = vunpack.c.l.b16 %v76
  %v109 = vunpack.c.l.b16 %v77
  %v110 = vunpack.c.l.b16 %v78
  %v111 = vunpack.c.l.b16 %v79
  %v112 = vunpack.c.l.b16 %v80
  %v113 = vunpack.c.l.b16 %v81
  %v114 = vunpack.c.l.b16 %v82
  %v115 = vpack.c.b16 %v100, %v99
  %v116 = vpack.c.b16 %v102, %v101
  %v117 = vpack.c.b16 %v104, %v103
  %v118 = vpack.c.b16 %v106, %v105
  %v119 = vpack.c.b16 %v108, %v107
  %v120 = vpack.c.b16 %v110, %v109
  %v121 = vpack.c.b16 %v112, %v111
  %v122 = vpack.c.b16 %v114, %v113
  %131 = vmatprep.subr.bf16.mxu0 0
  %132 = vmatpush1.bf16.msra.mxu0 %v115
  %133 = vmatprep.subr.bf16.mxu0 0
  %134 = vmatpush1.bf16.msra.mxu0 %v116
  %135 = vmatprep.subr.bf16.mxu0 0
  %136 = vmatpush1.bf16.msra.mxu0 %v117
  %137 = vmatprep.subr.bf16.mxu0 0
  %138 = vmatpush1.bf16.msra.mxu0 %v118
  %139 = vmatprep.subr.bf16.mxu0 0
  %140 = vmatpush1.bf16.msra.mxu0 %v119
  %141 = vmatprep.subr.bf16.mxu0 0
  %142 = vmatpush1.bf16.msra.mxu0 %v120
  %143 = vmatprep.subr.bf16.mxu0 0
  %144 = vmatpush1.bf16.msra.mxu0 %v121
  %145 = vmatprep.subr.bf16.mxu0 0
  %146 = vmatpush1.bf16.msra.mxu0 %v122
  %147 = vmatprep.subr.bf16.mxu0 0
  %148 = vmatpush1.bf16.msra.mxu0 0
  %149 = vmatprep.subr.bf16.mxu0 0
  %150 = vmatpush1.bf16.msra.mxu0 0
  %151 = vmatprep.subr.bf16.mxu0 0
  %152 = vmatpush1.bf16.msra.mxu0 0
  %153 = vmatprep.subr.bf16.mxu0 0
  %154 = vmatpush1.bf16.msra.mxu0 0
  %155 = vmatprep.subr.bf16.mxu0 0
  %156 = vmatpush1.bf16.msra.mxu0 0
  %157 = vmatprep.subr.bf16.mxu0 0
  %158 = vmatpush1.bf16.msra.mxu0 0
  %159 = vmatprep.subr.bf16.mxu0 0
  %160 = vmatpush1.bf16.msra.mxu0 0
  %161 = vmatprep.subr.bf16.mxu0 0
  %162 = vmatpush1.bf16.msra.mxu0 0
  %163 = vmatprep.mubr.bf16.mxu0 0
  %164 = vmatmul.mubr.bf16.gmra.mrb[0].mxu0 %v51
  %v165 = vpop.f32.mrb[0].mxu0
  %v166 = vadd.f32 0.0, %v165
  %v167 = vpop.f32.mrb[0].mxu0
  %v168 = vpop.f32.mrb[0].mxu0
  %v169 = vadd.f32 0.0, %v168
  %v170 = vpop.f32.mrb[0].mxu0
  %171 = vmatprep.mubr.bf16.mxu0 0
  %172 = vmatmul.mubr.bf16.gmra.mrb[0].mxu0 %v52
  %v173 = vpop.f32.mrb[0].mxu0
  %v174 = vadd.f32 0.0, %v173
  %v175 = vpop.f32.mrb[0].mxu0
  %v176 = vpop.f32.mrb[0].mxu0
  %v177 = vadd.f32 0.0, %v176
  %v178 = vpop.f32.mrb[0].mxu0
  %179 = vmatprep.mubr.bf16.mxu0 0
  %180 = vmatmul.mubr.bf16.gmra.mrb[0].mxu0 %v53
  %v181 = vpop.f32.mrb[0].mxu0
  %v182 = vadd.f32 0.0, %v181
  %v183 = vpop.f32.mrb[0].mxu0
  %v184 = vpop.f32.mrb[0].mxu0
  %v185 = vadd.f32 0.0, %v184
  %v186 = vpop.f32.mrb[0].mxu0
  %187 = vmatprep.mubr.bf16.mxu0 0
  %188 = vmatmul.mubr.bf16.gmra.mrb[0].mxu0 %v54
  %v189 = vpop.f32.mrb[0].mxu0
  %v190 = vadd.f32 0.0, %v189
  %v191 = vpop.f32.mrb[0].mxu0
  %v192 = vpop.f32.mrb[0].mxu0
  %v193 = vadd.f32 0.0, %v192
  %v194 = vpop.f32.mrb[0].mxu0
  %195 = vmatprep.mubr.bf16.mxu0 0
  %196 = vmatmul.mubr.bf16.gmra.mrb[0].mxu0 %v55
  %v197 = vpop.f32.mrb[0].mxu0
  %v198 = vadd.f32 0.0, %v197
  %v199 = vpop.f32.mrb[0].mxu0
  %v200 = vpop.f32.mrb[0].mxu0
  %v201 = vadd.f32 0.0, %v200
  %v202 = vpop.f32.mrb[0].mxu0
  %203 = vmatprep.mubr.bf16.mxu0 0
  %204 = vmatmul.mubr.bf16.gmra.mrb[0].mxu0 %v56
  %v205 = vpop.f32.mrb[0].mxu0
  %v206 = vadd.f32 0.0, %v205
  %v207 = vpop.f32.mrb[0].mxu0
  %v208 = vpop.f32.mrb[0].mxu0
  %v209 = vadd.f32 0.0, %v208
  %v210 = vpop.f32.mrb[0].mxu0
  %211 = vmatprep.mubr.bf16.mxu0 0
  %212 = vmatmul.mubr.bf16.gmra.mrb[0].mxu0 %v57
  %v213 = vpop.f32.mrb[0].mxu0
  %v214 = vadd.f32 0.0, %v213
  %v215 = vpop.f32.mrb[0].mxu0
  %v216 = vpop.f32.mrb[0].mxu0
  %v217 = vadd.f32 0.0, %v216
  %v218 = vpop.f32.mrb[0].mxu0
  %219 = vmatprep.mubr.bf16.mxu0 0
  %220 = vmatmul.mubr.bf16.gmra.mrb[0].mxu0 %v58
  %v221 = vpop.f32.mrb[0].mxu0
  %v222 = vadd.f32 0.0, %v221
  %v223 = vpop.f32.mrb[0].mxu0
  %v224 = vpop.f32.mrb[0].mxu0
  %v225 = vadd.f32 0.0, %v224
  %v226 = vpop.f32.mrb[0].mxu0
  %227 = vmatprep.mubr.bf16.mxu0 0
  %228 = vmatmul.mubr.bf16.gmra.mrb[0].mxu0 %v59
  %v229 = vpop.f32.mrb[0].mxu0
  %v230 = vadd.f32 0.0, %v229
  %v231 = vpop.f32.mrb[0].mxu0
  %v232 = vpop.f32.mrb[0].mxu0
  %v233 = vadd.f32 0.0, %v232
  %v234 = vpop.f32.mrb[0].mxu0
  %235 = vmatprep.mubr.bf16.mxu0 0
  %236 = vmatmul.mubr.bf16.gmra.mrb[0].mxu0 %v60
  %v237 = vpop.f32.mrb[0].mxu0
  %v238 = vadd.f32 0.0, %v237
  %v239 = vpop.f32.mrb[0].mxu0
  %v240 = vpop.f32.mrb[0].mxu0
  %v241 = vadd.f32 0.0, %v240
  %v242 = vpop.f32.mrb[0].mxu0
  %243 = vmatprep.mubr.bf16.mxu0 0
  %244 = vmatmul.mubr.bf16.gmra.mrb[0].mxu0 %v61
  %v245 = vpop.f32.mrb[0].mxu0
  %v246 = vadd.f32 0.0, %v245
  %v247 = vpop.f32.mrb[0].mxu0
  %v248 = vpop.f32.mrb[0].mxu0
  %v249 = vadd.f32 0.0, %v248
  %v250 = vpop.f32.mrb[0].mxu0
  %251 = vmatprep.mubr.bf16.mxu0 0
  %252 = vmatmul.mubr.bf16.gmra.mrb[0].mxu0 %v62
  %v253 = vpop.f32.mrb[0].mxu0
  %v254 = vadd.f32 0.0, %v253
  %v255 = vpop.f32.mrb[0].mxu0
  %v256 = vpop.f32.mrb[0].mxu0
  %v257 = vadd.f32 0.0, %v256
  %v258 = vpop.f32.mrb[0].mxu0
  %259 = vmatprep.mubr.bf16.mxu0 0
  %260 = vmatmul.mubr.bf16.gmra.mrb[0].mxu0 %v63
  %v261 = vpop.f32.mrb[0].mxu0
  %v262 = vadd.f32 0.0, %v261
  %v263 = vpop.f32.mrb[0].mxu0
  %v264 = vpop.f32.mrb[0].mxu0
  %v265 = vadd.f32 0.0, %v264
  %v266 = vpop.f32.mrb[0].mxu0
  %267 = vmatprep.mubr.bf16.mxu0 0
  %268 = vmatmul.mubr.bf16.gmra.mrb[0].mxu0 %v64
  %v269 = vpop.f32.mrb[0].mxu0
  %v270 = vadd.f32 0.0, %v269
  %v271 = vpop.f32.mrb[0].mxu0
  %v272 = vpop.f32.mrb[0].mxu0
  %v273 = vadd.f32 0.0, %v272
  %v274 = vpop.f32.mrb[0].mxu0
  %275 = vmatprep.mubr.bf16.mxu0 0
  %276 = vmatmul.mubr.bf16.gmra.mrb[0].mxu0 %v65
  %v277 = vpop.f32.mrb[0].mxu0
  %v278 = vadd.f32 0.0, %v277
  %v279 = vpop.f32.mrb[0].mxu0
  %v280 = vpop.f32.mrb[0].mxu0
  %v281 = vadd.f32 0.0, %v280
  %v282 = vpop.f32.mrb[0].mxu0
  %283 = vmatprep.mubr.bf16.mxu0 0
  %284 = vmatmul.mubr.bf16.gmra.mrb[0].mxu0 %v66
  %v285 = vpop.f32.mrb[0].mxu0
  %v286 = vadd.f32 0.0, %v285
  %v287 = vpop.f32.mrb[0].mxu0
  %v288 = vpop.f32.mrb[0].mxu0
  %v289 = vadd.f32 0.0, %v288
  %v290 = vpop.f32.mrb[0].mxu0
  %291 = vdwg.mxu0
  %v292 = vld [vmem:[%s3] sm:$0xff]
  %v293 = vld [vmem:[%s3 + $0x8] sm:$0xff]
  %v294 = vld [vmem:[%s3 + $0x10] sm:$0xff]
  %v295 = vld [vmem:[%s3 + $0x18] sm:$0xff]
  %v296 = vld [vmem:[%s3 + $0x20] sm:$0xff]
  %v297 = vld [vmem:[%s3 + $0x28] sm:$0xff]
  %v298 = vld [vmem:[%s3 + $0x30] sm:$0xff]
  %v299 = vld [vmem:[%s3 + $0x38] sm:$0xff]
  %v300 = vld [vmem:[%s3 + $0x40] sm:$0xff]
  %v301 = vld [vmem:[%s3 + $0x48] sm:$0xff]
  %v302 = vld [vmem:[%s3 + $0x50] sm:$0xff]
  %v303 = vld [vmem:[%s3 + $0x58] sm:$0xff]
  %v304 = vld [vmem:[%s3 + $0x60] sm:$0xff]
  %v305 = vld [vmem:[%s3 + $0x68] sm:$0xff]
  %v306 = vld [vmem:[%s3 + $0x70] sm:$0xff]
  %v307 = vld [vmem:[%s3 + $0x78] sm:$0xff]
  %v308 = vld [vmem:[%s3 + $0x80] sm:$0xff]
  %v309 = vld [vmem:[%s3 + $0x88] sm:$0xff]
  %v310 = vld [vmem:[%s3 + $0x90] sm:$0xff]
  %v311 = vld [vmem:[%s3 + $0x98] sm:$0xff]
  %v312 = vld [vmem:[%s3 + $0xa0] sm:$0xff]
  %v313 = vld [vmem:[%s3 + $0xa8] sm:$0xff]
  %v314 = vld [vmem:[%s3 + $0xb0] sm:$0xff]
  %v315 = vld [vmem:[%s3 + $0xb8] sm:$0xff]
  %v316 = vld [vmem:[%s3 + $0xc0] sm:$0xff]
  %v317 = vld [vmem:[%s3 + $0xc8] sm:$0xff]
  %v318 = vld [vmem:[%s3 + $0xd0] sm:$0xff]
  %v319 = vld [vmem:[%s3 + $0xd8] sm:$0xff]
  %v320 = vld [vmem:[%s3 + $0xe0] sm:$0xff]
  %v321 = vld [vmem:[%s3 + $0xe8] sm:$0xff]
  %v322 = vld [vmem:[%s3 + $0xf0] sm:$0xff]
  %v323 = vld [vmem:[%s3 + $0xf8] sm:$0xff]
  %325 = vset.pattern.permute.xlu0 0
  %326 = vperm.xlu0 %325, %v292
  %v327 = vpop.permute.xlu0 %326
  %330 = vset.pattern.permute.xlu0 0
  %331 = vperm.xlu0 %330, %v293
  %v332 = vpop.permute.xlu0 %331
  %335 = vset.pattern.permute.xlu0 0
  %336 = vperm.xlu0 %335, %v294
  %v337 = vpop.permute.xlu0 %336
  %340 = vset.pattern.permute.xlu0 0
  %341 = vperm.xlu0 %340, %v295
  %v342 = vpop.permute.xlu0 %341
  %345 = vset.pattern.permute.xlu0 0
  %346 = vperm.xlu0 %345, %v296
  %v347 = vpop.permute.xlu0 %346
  %350 = vset.pattern.permute.xlu0 0
  %351 = vperm.xlu0 %350, %v297
  %v352 = vpop.permute.xlu0 %351
  %355 = vset.pattern.permute.xlu0 0
  %356 = vperm.xlu0 %355, %v298
  %v357 = vpop.permute.xlu0 %356
  %360 = vset.pattern.permute.xlu0 0
  %361 = vperm.xlu0 %360, %v299
  %v362 = vpop.permute.xlu0 %361
  %365 = vset.pattern.permute.xlu0 0
  %366 = vperm.xlu0 %365, %v300
  %v367 = vpop.permute.xlu0 %366
  %370 = vset.pattern.permute.xlu0 0
  %371 = vperm.xlu0 %370, %v301
  %v372 = vpop.permute.xlu0 %371
  %375 = vset.pattern.permute.xlu0 0
  %376 = vperm.xlu0 %375, %v302
  %v377 = vpop.permute.xlu0 %376
  %380 = vset.pattern.permute.xlu0 0
  %381 = vperm.xlu0 %380, %v303
  %v382 = vpop.permute.xlu0 %381
  %385 = vset.pattern.permute.xlu0 0
  %386 = vperm.xlu0 %385, %v304
  %v387 = vpop.permute.xlu0 %386
  %390 = vset.pattern.permute.xlu0 0
  %391 = vperm.xlu0 %390, %v305
  %v392 = vpop.permute.xlu0 %391
  %395 = vset.pattern.permute.xlu0 0
  %396 = vperm.xlu0 %395, %v306
  %v397 = vpop.permute.xlu0 %396
  %400 = vset.pattern.permute.xlu0 0
  %401 = vperm.xlu0 %400, %v307
  %v402 = vpop.permute.xlu0 %401
  %405 = vset.pattern.permute.xlu0 0
  %406 = vperm.xlu0 %405, %v308
  %v407 = vpop.permute.xlu0 %406
  %410 = vset.pattern.permute.xlu0 0
  %411 = vperm.xlu0 %410, %v309
  %v412 = vpop.permute.xlu0 %411
  %415 = vset.pattern.permute.xlu0 0
  %416 = vperm.xlu0 %415, %v310
  %v417 = vpop.permute.xlu0 %416
  %420 = vset.pattern.permute.xlu0 0
  %421 = vperm.xlu0 %420, %v311
  %v422 = vpop.permute.xlu0 %421
  %425 = vset.pattern.permute.xlu0 0
  %426 = vperm.xlu0 %425, %v312
  %v427 = vpop.permute.xlu0 %426
  %430 = vset.pattern.permute.xlu0 0
  %431 = vperm.xlu0 %430, %v313
  %v432 = vpop.permute.xlu0 %431
  %435 = vset.pattern.permute.xlu0 0
  %436 = vperm.xlu0 %435, %v314
  %v437 = vpop.permute.xlu0 %436
  %440 = vset.pattern.permute.xlu0 0
  %441 = vperm.xlu0 %440, %v315
  %v442 = vpop.permute.xlu0 %441
  %445 = vset.pattern.permute.xlu0 0
  %446 = vperm.xlu0 %445, %v316
  %v447 = vpop.permute.xlu0 %446
  %450 = vset.pattern.permute.xlu0 0
  %451 = vperm.xlu0 %450, %v317
  %v452 = vpop.permute.xlu0 %451
  %455 = vset.pattern.permute.xlu0 0
  %456 = vperm.xlu0 %455, %v318
  %v457 = vpop.permute.xlu0 %456
  %460 = vset.pattern.permute.xlu0 0
  %461 = vperm.xlu0 %460, %v319
  %v462 = vpop.permute.xlu0 %461
  %465 = vset.pattern.permute.xlu0 0
  %466 = vperm.xlu0 %465, %v320
  %v467 = vpop.permute.xlu0 %466
  %470 = vset.pattern.permute.xlu0 0
  %471 = vperm.xlu0 %470, %v321
  %v472 = vpop.permute.xlu0 %471
  %475 = vset.pattern.permute.xlu0 0
  %476 = vperm.xlu0 %475, %v322
  %v477 = vpop.permute.xlu0 %476
  %480 = vset.pattern.permute.xlu0 0
  %481 = vperm.xlu0 %480, %v323
  %v482 = vpop.permute.xlu0 %481
  %v484 = vmul.f32 %v166, %v327
  %v485 = vmul.f32 %v169, %v332
  %v486 = vmul.f32 %v174, %v337
  %v487 = vmul.f32 %v177, %v342
  %v488 = vmul.f32 %v182, %v347
  %v489 = vmul.f32 %v185, %v352
  %v490 = vmul.f32 %v190, %v357
  %v491 = vmul.f32 %v193, %v362
  %v492 = vmul.f32 %v198, %v367
  %v493 = vmul.f32 %v201, %v372
  %v494 = vmul.f32 %v206, %v377
  %v495 = vmul.f32 %v209, %v382
  %v496 = vmul.f32 %v214, %v387
  %v497 = vmul.f32 %v217, %v392
  %v498 = vmul.f32 %v222, %v397
  %v499 = vmul.f32 %v225, %v402
  %v500 = vmul.f32 %v230, %v407
  %v501 = vmul.f32 %v233, %v412
  %v502 = vmul.f32 %v238, %v417
  %v503 = vmul.f32 %v241, %v422
  %v504 = vmul.f32 %v246, %v427
  %v505 = vmul.f32 %v249, %v432
  %v506 = vmul.f32 %v254, %v437
  %v507 = vmul.f32 %v257, %v442
  %v508 = vmul.f32 %v262, %v447
  %v509 = vmul.f32 %v265, %v452
  %v510 = vmul.f32 %v270, %v457
  %v511 = vmul.f32 %v273, %v462
  %v512 = vmul.f32 %v278, %v467
  %v513 = vmul.f32 %v281, %v472
  %v514 = vmul.f32 %v286, %v477
  %v515 = vmul.f32 %v289, %v482
  %v516 = vpack.c.bf16 %v485, %v484
  %v517 = vpack.c.bf16 %v487, %v486
  %v518 = vpack.c.bf16 %v489, %v488
  %v519 = vpack.c.bf16 %v491, %v490
  %v520 = vpack.c.bf16 %v493, %v492
  %v521 = vpack.c.bf16 %v495, %v494
  %v522 = vpack.c.bf16 %v497, %v496
  %v523 = vpack.c.bf16 %v499, %v498
  %v524 = vpack.c.bf16 %v501, %v500
  %v525 = vpack.c.bf16 %v503, %v502
  %v526 = vpack.c.bf16 %v505, %v504
  %v527 = vpack.c.bf16 %v507, %v506
  %v528 = vpack.c.bf16 %v509, %v508
  %v529 = vpack.c.bf16 %v511, %v510
  %v530 = vpack.c.bf16 %v513, %v512
  %v531 = vpack.c.bf16 %v515, %v514
  %v548 = vunpack.c.l.b16 %v516
  %v549 = vunpack.c.h.b16 %v516
  %v550 = vunpack.c.l.b16 %v517
  %v551 = vunpack.c.h.b16 %v517
  %v552 = vunpack.c.l.b16 %v518
  %v553 = vunpack.c.h.b16 %v518
  %v554 = vunpack.c.l.b16 %v519
  %v555 = vunpack.c.h.b16 %v519
  %v556 = vunpack.c.l.b16 %v520
  %v557 = vunpack.c.h.b16 %v520
  %v558 = vunpack.c.l.b16 %v521
  %v559 = vunpack.c.h.b16 %v521
  %v560 = vunpack.c.l.b16 %v522
  %v561 = vunpack.c.h.b16 %v522
  %v562 = vunpack.c.l.b16 %v523
  %v563 = vunpack.c.h.b16 %v523
  %v564 = vunpack.c.l.b16 %v524
  %v565 = vunpack.c.h.b16 %v524
  %v566 = vunpack.c.l.b16 %v525
  %v567 = vunpack.c.h.b16 %v525
  %v568 = vunpack.c.l.b16 %v526
  %v569 = vunpack.c.h.b16 %v526
  %v570 = vunpack.c.l.b16 %v527
  %v571 = vunpack.c.h.b16 %v527
  %v572 = vunpack.c.l.b16 %v528
  %v573 = vunpack.c.h.b16 %v528
  %v574 = vunpack.c.l.b16 %v529
  %v575 = vunpack.c.h.b16 %v529
  %v576 = vunpack.c.l.b16 %v530
  %v577 = vunpack.c.h.b16 %v530
  %v578 = vunpack.c.l.b16 %v531
  %v579 = vunpack.c.h.b16 %v531
  %v580 = vpack.c.b16 %v548, %v548
  %v581 = vpack.c.b16 %v549, %v549
  %v582 = vpack.c.b16 %v550, %v550
  %v583 = vpack.c.b16 %v551, %v551
  %v584 = vpack.c.b16 %v552, %v552
  %v585 = vpack.c.b16 %v553, %v553
  %v586 = vpack.c.b16 %v554, %v554
  %v587 = vpack.c.b16 %v555, %v555
  %v588 = vpack.c.b16 %v556, %v556
  %v589 = vpack.c.b16 %v557, %v557
  %v590 = vpack.c.b16 %v558, %v558
  %v591 = vpack.c.b16 %v559, %v559
  %v592 = vpack.c.b16 %v560, %v560
  %v593 = vpack.c.b16 %v561, %v561
  %v594 = vpack.c.b16 %v562, %v562
  %v595 = vpack.c.b16 %v563, %v563
  %v596 = vpack.c.b16 %v564, %v564
  %v597 = vpack.c.b16 %v565, %v565
  %v598 = vpack.c.b16 %v566, %v566
  %v599 = vpack.c.b16 %v567, %v567
  %v600 = vpack.c.b16 %v568, %v568
  %v601 = vpack.c.b16 %v569, %v569
  %v602 = vpack.c.b16 %v570, %v570
  %v603 = vpack.c.b16 %v571, %v571
  %v604 = vpack.c.b16 %v572, %v572
  %v605 = vpack.c.b16 %v573, %v573
  %v606 = vpack.c.b16 %v574, %v574
  %v607 = vpack.c.b16 %v575, %v575
  %v608 = vpack.c.b16 %v576, %v576
  %v609 = vpack.c.b16 %v577, %v577
  %v610 = vpack.c.b16 %v578, %v578
  %v611 = vpack.c.b16 %v579, %v579
  %644 = vst [vmem:[%s4] sm:$0xf] %v580
  %645 = vst [vmem:[%s4 + $0x4] sm:$0xf] %v581
  %646 = vst [vmem:[%s4 + $0x8] sm:$0xf] %v582
  %647 = vst [vmem:[%s4 + $0xc] sm:$0xf] %v583
  %648 = vst [vmem:[%s4 + $0x10] sm:$0xf] %v584
  %649 = vst [vmem:[%s4 + $0x14] sm:$0xf] %v585
  %650 = vst [vmem:[%s4 + $0x18] sm:$0xf] %v586
  %651 = vst [vmem:[%s4 + $0x1c] sm:$0xf] %v587
  %652 = vst [vmem:[%s4 + $0x20] sm:$0xf] %v588
  %653 = vst [vmem:[%s4 + $0x24] sm:$0xf] %v589
  %654 = vst [vmem:[%s4 + $0x28] sm:$0xf] %v590
  %655 = vst [vmem:[%s4 + $0x2c] sm:$0xf] %v591
  %656 = vst [vmem:[%s4 + $0x30] sm:$0xf] %v592
  %657 = vst [vmem:[%s4 + $0x34] sm:$0xf] %v593
  %658 = vst [vmem:[%s4 + $0x38] sm:$0xf] %v594
  %659 = vst [vmem:[%s4 + $0x3c] sm:$0xf] %v595
  %660 = vst [vmem:[%s4 + $0x40] sm:$0xf] %v596
  %661 = vst [vmem:[%s4 + $0x44] sm:$0xf] %v597
  %662 = vst [vmem:[%s4 + $0x48] sm:$0xf] %v598
  %663 = vst [vmem:[%s4 + $0x4c] sm:$0xf] %v599
  %664 = vst [vmem:[%s4 + $0x50] sm:$0xf] %v600
  %665 = vst [vmem:[%s4 + $0x54] sm:$0xf] %v601
  %666 = vst [vmem:[%s4 + $0x58] sm:$0xf] %v602
  %667 = vst [vmem:[%s4 + $0x5c] sm:$0xf] %v603
  %668 = vst [vmem:[%s4 + $0x60] sm:$0xf] %v604
  %669 = vst [vmem:[%s4 + $0x64] sm:$0xf] %v605
  %670 = vst [vmem:[%s4 + $0x68] sm:$0xf] %v606
  %671 = vst [vmem:[%s4 + $0x6c] sm:$0xf] %v607
  %672 = vst [vmem:[%s4 + $0x70] sm:$0xf] %v608
  %673 = vst [vmem:[%s4 + $0x74] sm:$0xf] %v609
  %674 = vst [vmem:[%s4 + $0x78] sm:$0xf] %v610
  %675 = vst [vmem:[%s4 + $0x7c] sm:$0xf] %v611
  // Predicated region
  $region18: #{encoder_forward.3} parent=0 // pred_check
    _
  $region19: #{encoder_forward.3} parent=0 // pred_check_branch
    %677 = sbr.rel (0) target = $region21
  $region20: #{encoder_forward.3} parent=0 // pred_region
    _
  $region21: #{encoder_forward.3} parent=0 // pred_fallthru
    _
  // Predicated region
  $region22: #{encoder_forward.3} parent=0 // pred_check
    _
  $region23: #{encoder_forward.3} parent=0 // pred_check_branch
    %679 = sbr.rel (0) target = $region25
  $region24: #{encoder_forward.3} parent=0 // pred_region
    _
  $region25: #{encoder_forward.3} parent=0 // pred_fallthru
    _

</llo_original>
